<compile_context>
chip_gen: v7x
topology: tpu7x:2x2x1
jax: 0.10.0
libtpu: 0.0.40
codegen_flags: <defaults>
</compile_context>

<pallas_src>
import functools

import jax
import jax.numpy as jnp
from jax.experimental import pallas as pl
from jax.experimental.pallas import tpu as pltpu


def _round_up(x, m):
    return (x + m - 1) // m * m


def _pick_tile(total, target, quantum):
    """Largest multiple of `quantum` dividing `total`, capped near `target`.

    NOTE: for awkward `total` this can collapse to `quantum`; at production shapes
    prefer cdiv-based tiling with a remainder tile.
    """
    t = min(total, max(quantum, (target // quantum) * quantum))
    while t > quantum and total % t:
        t -= quantum
    return t if total % t == 0 else total


def rnn_recurrence_kernel(x_ref, h0_ref, whh_t_ref, y_ref, h_scratch, *, steps):
    """One grid step == `steps` RNN time steps (statically unrolled).

    x_ref     : (steps, b_pad, H_pad)  gathered (W_ih^T row + fused bias) per token
    h0_ref    : (b_pad, H_pad)         initial hidden state
    whh_t_ref : (H_pad, H_pad)         W_hh^T
    y_ref     : (steps, b_pad, H_pad)  hidden states for this block of time steps
    h_scratch : (b_pad, H_pad)         carried hidden state (VMEM, persists across grid)
    """
    blk = pl.program_id(0)

    @pl.when(blk == 0)
    def _():
        h_scratch[...] = h0_ref[...]

    for u in range(steps):  # static unroll: full scheduler visibility, no loop carry
        h_new = jnp.tanh(
            x_ref[u]
            + jnp.dot(h_scratch[...], whh_t_ref[...],
                      preferred_element_type=jnp.float32)
        )
        h_scratch[...] = h_new
        y_ref[u] = h_new


def head_matmul_kernel(y_ref, w_ref, b_ref, o_ref):
    """logits tile = Y_tile @ W_out^T_tile + b_out_tile (lane-dense MXU matmul)."""
    o_ref[...] = (
        jnp.dot(y_ref[...], w_ref[...], preferred_element_type=jnp.float32)
        + b_ref[...]
    )


@functools.partial(jax.jit,
                   static_argnames=("vocab_size", "num_hiddens", "steps_per_block"))
def rnn_model_forward(inputs, state, params, *, vocab_size, num_hiddens,
                      steps_per_block=16):
    """Forward pass equivalent to RNNModel.forward(inputs, state).

    inputs: (batch, seq) int token ids
    state : (1, batch, num_hiddens) float32
    returns (output, state) with output shape (seq*batch, vocab_size)
    """
    W_ih, W_hh, b_ih, b_hh, W_out, b_out = params
    batch, seq = inputs.shape

    # (8, 128)-friendly padded sizes.
    B_pad = _round_up(batch, 8)
    H_pad = _round_up(num_hiddens, 128)
    V_pad = _round_up(vocab_size, 128)
    U = steps_per_block
    seq_pad = _round_up(seq, U)
    n_blocks = seq_pad // U

    # ---- wrapper-side glue (layout plumbing, not compute hoisting) -----------
    # Fold b_ih + b_hh into the W_ih^T rows: every gathered x row already carries
    # the bias. Padded hidden columns stay 0, so padded columns of h stay tanh(0)=0.
    wih_t_b = jnp.zeros((vocab_size, H_pad), jnp.float32)
    wih_t_b = wih_t_b.at[:, :num_hiddens].set(W_ih.T + (b_ih + b_hh)[None, :])

    # Time-major padded ids. Padded slots index row 0: harmless, since padded
    # batch rows are independent in the recurrence and padded rows/steps are
    # stripped before returning.
    ids_tm = jnp.zeros((seq_pad, B_pad), jnp.int32)
    ids_tm = ids_tm.at[:seq, :batch].set(inputs.T.astype(jnp.int32))

    # one_hot(ids) @ W_ih^T  ==  row gather of W_ih^T: do it here with jnp.take and
    # stream dense (U, B_pad, H_pad) blocks into the recurrence kernel.  W_ih^T is
    # never VMEM-resident in the kernel (matters at production vocab on v7x 64 MiB).
    x_seq = jnp.take(wih_t_b, ids_tm, axis=0)          # (seq_pad, B_pad, H_pad)

    whh_t = jnp.zeros((H_pad, H_pad), jnp.float32).at[:num_hiddens, :num_hiddens].set(W_hh.T)
    h0 = jnp.zeros((B_pad, H_pad), jnp.float32).at[:batch, :num_hiddens].set(state[0])
    wout_t = jnp.zeros((H_pad, V_pad), jnp.float32).at[:num_hiddens, :vocab_size].set(W_out.T)
    bout = jnp.zeros((1, V_pad), jnp.float32).at[0, :vocab_size].set(b_out)

    # ---- recurrence kernel: serial grid over blocks of U time steps ----------
    kernel = functools.partial(rnn_recurrence_kernel, steps=U)
    y_pad = pl.pallas_call(
        kernel,
        out_shape=jax.ShapeDtypeStruct((seq_pad, B_pad, H_pad), jnp.float32),
        grid_spec=pltpu.PrefetchScalarGridSpec(
            num_scalar_prefetch=0,
            grid=(n_blocks,),
            in_specs=[
                pl.BlockSpec((U, B_pad, H_pad), lambda i: (i, 0, 0)),   # streamed x
                pl.BlockSpec((B_pad, H_pad), lambda i: (0, 0)),         # h0 (invariant)
                pl.BlockSpec((H_pad, H_pad), lambda i: (0, 0)),         # W_hh^T (invariant)
            ],
            out_specs=pl.BlockSpec((U, B_pad, H_pad), lambda i: (i, 0, 0)),
            scratch_shapes=[
                pltpu.VMEM((B_pad, H_pad), jnp.float32),                # carried hidden
            ],
        ),
        compiler_params=pltpu.CompilerParams(
            dimension_semantics=("arbitrary",),       # serial recurrence
            vmem_limit_bytes=32 * 1024 * 1024,        # fits v7x's 64 MiB physical too
        ),
    )(x_seq, h0, whh_t)

    # Final hidden state is simply Y[seq-1]; no in-kernel freeze logic needed.
    new_state = y_pad[seq - 1, :batch, :num_hiddens][None]

    # ---- Linear head: 2D "parallel" tiled matmul over (M, vocab) -------------
    M_pad = seq_pad * B_pad
    y2d = y_pad.reshape(M_pad, H_pad)
    tm = _pick_tile(M_pad, 512, 8)      # M tile (sublane-quantized)
    tn = _pick_tile(V_pad, 2048, 128)   # vocab tile (lane-quantized)

    logits_pad = pl.pallas_call(
        head_matmul_kernel,
        out_shape=jax.ShapeDtypeStruct((M_pad, V_pad), jnp.float32),
        grid=(M_pad // tm, V_pad // tn),
        in_specs=[
            pl.BlockSpec((tm, H_pad), lambda i, j: (i, 0)),
            pl.BlockSpec((H_pad, tn), lambda i, j: (0, j)),
            pl.BlockSpec((1, tn), lambda i, j: (0, j)),
        ],
        out_specs=pl.BlockSpec((tm, tn), lambda i, j: (i, j)),
        compiler_params=pltpu.CompilerParams(
            dimension_semantics=("parallel", "parallel"),
            vmem_limit_bytes=32 * 1024 * 1024,
        ),
    )(y2d, wout_t, bout)

    # Strip padding; matches `self.linear(Y.reshape((-1, H)))` time-major row order.
    logits = (logits_pad.reshape(seq_pad, B_pad, V_pad)[:seq, :batch, :vocab_size]
              .reshape(seq * batch, vocab_size))
    return logits, new_state


def reference_forward(inputs, state, params, vocab_size, num_hiddens):
    """Pure-JAX reference matching PyTorch nn.RNN + Linear semantics."""
    W_ih, W_hh, b_ih, b_hh, W_out, b_out = params
    X = jax.nn.one_hot(inputs.T, vocab_size, dtype=jnp.float32)   # (seq, B, V)
    h = state[0]                                                  # (B, H)
    ys = []
    for t in range(X.shape[0]):
        h = jnp.tanh(X[t] @ W_ih.T + b_ih + h @ W_hh.T + b_hh)
        ys.append(h)
    Y = jnp.stack(ys, axis=0)                                     # (seq, B, H)
    out = Y.reshape(-1, num_hiddens) @ W_out.T + b_out
    return out, h[None]


if __name__ == "__main__":
    vocab_size = 28     # small d2l-style vocab
    num_hiddens = 32    # small stand-in for 256
    batch = 2
    seq = 8

    key = jax.random.PRNGKey(0)
    k_in, k_wih, k_whh, k_bih, k_bhh, k_wo, k_bo = jax.random.split(key, 7)

    # PyTorch-style init: RNN params ~ U(-1/sqrt(H), 1/sqrt(H)); Linear similar.
    r = 1.0 / jnp.sqrt(jnp.float32(num_hiddens))
    W_ih = jax.random.uniform(k_wih, (num_hiddens, vocab_size), jnp.float32, -r, r)
    W_hh = jax.random.uniform(k_whh, (num_hiddens, num_hiddens), jnp.float32, -r, r)
    b_ih = jax.random.uniform(k_bih, (num_hiddens,), jnp.float32, -r, r)
    b_hh = jax.random.uniform(k_bhh, (num_hiddens,), jnp.float32, -r, r)
    W_out = jax.random.uniform(k_wo, (vocab_size, num_hiddens), jnp.float32, -r, r)
    b_out = jax.random.uniform(k_bo, (vocab_size,), jnp.float32, -r, r)
    params = (W_ih, W_hh, b_ih, b_hh, W_out, b_out)

    # inputs: (batch, seq) token ids; begin_state: zeros (1, batch, H)
    inputs = jax.random.randint(k_in, (batch, seq), 0, vocab_size, dtype=jnp.int32)
    state0 = jnp.zeros((1, batch, num_hiddens), jnp.float32)

    out, state = rnn_model_forward(
        inputs, state0, params, vocab_size=vocab_size, num_hiddens=num_hiddens)
    out = jax.block_until_ready(out)
    state = jax.block_until_ready(state)

    assert out.shape == (seq * batch, vocab_size)
    assert state.shape == (1, batch, num_hiddens)

    ref_out, ref_state = reference_forward(inputs, state0, params, vocab_size, num_hiddens)
    assert jnp.allclose(out, ref_out, atol=1e-5, rtol=1e-5)
    assert jnp.allclose(state, ref_state, atol=1e-5, rtol=1e-5)

    print("KERNEL_OK")
</pallas_src>

<mosaic_0001>
module attributes {stable_mosaic.version = 11 : i64} {
  func.func @head_matmul_kernel(%arg0: i32, %arg1: i32, %arg2: memref<128x128xf32, #tpu.memory_space<vmem>>, %arg3: memref<128x128xf32, #tpu.memory_space<vmem>>, %arg4: memref<1x128xf32, #tpu.memory_space<vmem>>, %arg5: memref<128x128xf32, #tpu.memory_space<vmem>>) attributes {dimension_semantics = [#tpu.dimension_semantics<parallel>, #tpu.dimension_semantics<parallel>], iteration_bounds = array<i64: 1, 1>, scalar_prefetch = 0 : i64, scratch_operands = 0 : i64, tpu.core_type = #tpu.core_type<tc>, window_params = [{transform_indices = @transform_0, window_bounds = array<i64: 128, 128>}, {transform_indices = @transform_1, window_bounds = array<i64: 128, 128>}, {transform_indices = @transform_2, window_bounds = array<i64: 1, 128>}, {transform_indices = @transform_3, window_bounds = array<i64: 128, 128>}]} {
    %c0 = arith.constant 0 : index
    %c0_0 = arith.constant 0 : index
    %0 = vector.load %arg2[%c0, %c0_0] : memref<128x128xf32, #tpu.memory_space<vmem>>, vector<128x128xf32>
    %c0_1 = arith.constant 0 : index
    %c0_2 = arith.constant 0 : index
    %1 = vector.load %arg3[%c0_1, %c0_2] : memref<128x128xf32, #tpu.memory_space<vmem>>, vector<128x128xf32>
    %cst = arith.constant dense<0.000000e+00> : vector<128x128xf32>
    %2 = tpu.matmul %0, %1, %cst {dimension_numbers = #tpu.dot_dimension_numbers<[1], [0], [0], [1], [0, 0, 1, 1], [], []>} : vector<128x128xf32>, vector<128x128xf32>, vector<128x128xf32> -> vector<128x128xf32>
    %c0_3 = arith.constant 0 : index
    %c0_4 = arith.constant 0 : index
    %3 = vector.load %arg4[%c0_3, %c0_4] : memref<1x128xf32, #tpu.memory_space<vmem>>, vector<1x128xf32>
    %4 = vector.broadcast %3 : vector<1x128xf32> to vector<128x128xf32>
    %5 = arith.addf %2, %4 : vector<128x128xf32>
    %c0_5 = arith.constant 0 : index
    %c0_6 = arith.constant 0 : index
    %6 = vector.load %arg5[%c0_5, %c0_6] : memref<128x128xf32, #tpu.memory_space<vmem>>, vector<128x128xf32>
    tpu.vector_store %arg5[%c0_5, %c0_6], %5 {strides = array<i32>} : memref<128x128xf32, #tpu.memory_space<vmem>>, vector<128x128xf32>,
    return
  }
  func.func @transform_0(%arg0: i32, %arg1: i32) -> (i32, i32) {
    %c0_i32 = arith.constant 0 : i32
    %c0_i32_0 = arith.constant 0 : i32
    return %arg0, %c0_i32 : i32, i32
  }
  func.func @transform_1(%arg0: i32, %arg1: i32) -> (i32, i32) {
    %c0_i32 = arith.constant 0 : i32
    %c0_i32_0 = arith.constant 0 : i32
    return %c0_i32, %arg1 : i32, i32
  }
  func.func @transform_2(%arg0: i32, %arg1: i32) -> (i32, i32) {
    %c0_i32 = arith.constant 0 : i32
    %c0_i32_0 = arith.constant 0 : i32
    return %c0_i32, %arg1 : i32, i32
  }
  func.func @transform_3(%arg0: i32, %arg1: i32) -> (i32, i32) {
    %c0_i32 = arith.constant 0 : i32
    return %arg0, %arg1 : i32, i32
  }
}

module attributes {stable_mosaic.version = 11 : i64} {
  func.func @rnn_recurrence_kernel(%arg0: i32, %arg1: memref<16x8x128xf32, #tpu.memory_space<vmem>>, %arg2: memref<8x128xf32, #tpu.memory_space<vmem>>, %arg3: memref<128x128xf32, #tpu.memory_space<vmem>>, %arg4: memref<16x8x128xf32, #tpu.memory_space<vmem>>, %arg5: memref<8x128xf32, #tpu.memory_space<vmem>>) attributes {dimension_semantics = [#tpu.dimension_semantics<arbitrary>], iteration_bounds = array<i64: 1>, scalar_prefetch = 0 : i64, scratch_operands = 1 : i64, tpu.core_type = #tpu.core_type<tc>, window_params = [{transform_indices = @transform_0, window_bounds = array<i64: 16, 8, 128>}, {pipeline_mode = #tpu.pipeline_mode<synchronous>, transform_indices = @transform_1, window_bounds = array<i64: 8, 128>}, {pipeline_mode = #tpu.pipeline_mode<synchronous>, transform_indices = @transform_2, window_bounds = array<i64: 128, 128>}, {transform_indices = @transform_3, window_bounds = array<i64: 16, 8, 128>}]} {
    %c0_i32 = arith.constant 0 : i32
    %0 = arith.cmpi eq, %arg0, %c0_i32 : i32
    %1 = arith.extui %0 : i1 to i32
    %c0_i32_0 = arith.constant 0 : i32
    %2 = arith.cmpi ne, %1, %c0_i32_0 : i32
    scf.if %2 {
      %c0_192 = arith.constant 0 : index
      %c0_193 = arith.constant 0 : index
      %179 = vector.load %arg2[%c0_192, %c0_193] : memref<8x128xf32, #tpu.memory_space<vmem>>, vector<8x128xf32>
      %c0_194 = arith.constant 0 : index
      %c0_195 = arith.constant 0 : index
      %180 = vector.load %arg5[%c0_194, %c0_195] : memref<8x128xf32, #tpu.memory_space<vmem>>, vector<8x128xf32>
      tpu.vector_store %arg5[%c0_194, %c0_195], %179 {strides = array<i32>} : memref<8x128xf32, #tpu.memory_space<vmem>>, vector<8x128xf32>,
    } else {
    }
    %c0 = arith.constant 0 : index
    %c0_1 = arith.constant 0 : index
    %c0_2 = arith.constant 0 : index
    %3 = vector.load %arg1[%c0, %c0_1, %c0_2] : memref<16x8x128xf32, #tpu.memory_space<vmem>>, vector<1x8x128xf32>
    %4 = vector.shape_cast %3 : vector<1x8x128xf32> to vector<8x128xf32>
    %c0_3 = arith.constant 0 : index
    %c0_4 = arith.constant 0 : index
    %5 = vector.load %arg5[%c0_3, %c0_4] : memref<8x128xf32, #tpu.memory_space<vmem>>, vector<8x128xf32>
    %c0_5 = arith.constant 0 : index
    %c0_6 = arith.constant 0 : index
    %6 = vector.load %arg3[%c0_5, %c0_6] : memref<128x128xf32, #tpu.memory_space<vmem>>, vector<128x128xf32>
    %cst = arith.constant dense<0.000000e+00> : vector<8x128xf32>
    %7 = tpu.matmul %5, %6, %cst {dimension_numbers = #tpu.dot_dimension_numbers<[1], [0], [0], [1], [0, 0, 1, 1], [], []>} : vector<8x128xf32>, vector<128x128xf32>, vector<8x128xf32> -> vector<8x128xf32>
    %8 = arith.addf %4, %7 : vector<8x128xf32>
    %9 = math.tanh %8 : vector<8x128xf32>
    %c0_7 = arith.constant 0 : index
    %c0_8 = arith.constant 0 : index
    %10 = vector.load %arg5[%c0_7, %c0_8] : memref<8x128xf32, #tpu.memory_space<vmem>>, vector<8x128xf32>
    tpu.vector_store %arg5[%c0_7, %c0_8], %9 {strides = array<i32>} : memref<8x128xf32, #tpu.memory_space<vmem>>, vector<8x128xf32>,
    %c0_9 = arith.constant 0 : index
    %c0_10 = arith.constant 0 : index
    %c0_11 = arith.constant 0 : index
    %11 = vector.load %arg4[%c0_9, %c0_10, %c0_11] : memref<16x8x128xf32, #tpu.memory_space<vmem>>, vector<1x8x128xf32>
    %12 = vector.shape_cast %11 : vector<1x8x128xf32> to vector<8x128xf32>
    %13 = vector.shape_cast %9 : vector<8x128xf32> to vector<1x8x128xf32>
    tpu.vector_store %arg4[%c0_9, %c0_10, %c0_11], %13 {strides = array<i32>} : memref<16x8x128xf32, #tpu.memory_space<vmem>>, vector<1x8x128xf32>,
    %c1 = arith.constant 1 : index
    %c0_12 = arith.constant 0 : index
    %c0_13 = arith.constant 0 : index
    %14 = vector.load %arg1[%c1, %c0_12, %c0_13] : memref<16x8x128xf32, #tpu.memory_space<vmem>>, vector<1x8x128xf32>
    %15 = vector.shape_cast %14 : vector<1x8x128xf32> to vector<8x128xf32>
    %c0_14 = arith.constant 0 : index
    %c0_15 = arith.constant 0 : index
    %16 = vector.load %arg5[%c0_14, %c0_15] : memref<8x128xf32, #tpu.memory_space<vmem>>, vector<8x128xf32>
    %c0_16 = arith.constant 0 : index
    %c0_17 = arith.constant 0 : index
    %17 = vector.load %arg3[%c0_16, %c0_17] : memref<128x128xf32, #tpu.memory_space<vmem>>, vector<128x128xf32>
    %cst_18 = arith.constant dense<0.000000e+00> : vector<8x128xf32>
    %18 = tpu.matmul %16, %17, %cst_18 {dimension_numbers = #tpu.dot_dimension_numbers<[1], [0], [0], [1], [0, 0, 1, 1], [], []>} : vector<8x128xf32>, vector<128x128xf32>, vector<8x128xf32> -> vector<8x128xf32>
    %19 = arith.addf %15, %18 : vector<8x128xf32>
    %20 = math.tanh %19 : vector<8x128xf32>
    %c0_19 = arith.constant 0 : index
    %c0_20 = arith.constant 0 : index
    %21 = vector.load %arg5[%c0_19, %c0_20] : memref<8x128xf32, #tpu.memory_space<vmem>>, vector<8x128xf32>
    tpu.vector_store %arg5[%c0_19, %c0_20], %20 {strides = array<i32>} : memref<8x128xf32, #tpu.memory_space<vmem>>, vector<8x128xf32>,
    %c1_21 = arith.constant 1 : index
    %c0_22 = arith.constant 0 : index
    %c0_23 = arith.constant 0 : index
    %22 = vector.load %arg4[%c1_21, %c0_22, %c0_23] : memref<16x8x128xf32, #tpu.memory_space<vmem>>, vector<1x8x128xf32>
    %23 = vector.shape_cast %22 : vector<1x8x128xf32> to vector<8x128xf32>
    %24 = vector.shape_cast %20 : vector<8x128xf32> to vector<1x8x128xf32>
    tpu.vector_store %arg4[%c1_21, %c0_22, %c0_23], %24 {strides = array<i32>} : memref<16x8x128xf32, #tpu.memory_space<vmem>>, vector<1x8x128xf32>,
    %c2 = arith.constant 2 : index
    %c0_24 = arith.constant 0 : index
    %c0_25 = arith.constant 0 : index
    %25 = vector.load %arg1[%c2, %c0_24, %c0_25] : memref<16x8x128xf32, #tpu.memory_space<vmem>>, vector<1x8x128xf32>
    %26 = vector.shape_cast %25 : vector<1x8x128xf32> to vector<8x128xf32>
    %c0_26 = arith.constant 0 : index
    %c0_27 = arith.constant 0 : index
    %27 = vector.load %arg5[%c0_26, %c0_27] : memref<8x128xf32, #tpu.memory_space<vmem>>, vector<8x128xf32>
    %c0_28 = arith.constant 0 : index
    %c0_29 = arith.constant 0 : index
    %28 = vector.load %arg3[%c0_28, %c0_29] : memref<128x128xf32, #tpu.memory_space<vmem>>, vector<128x128xf32>
    %cst_30 = arith.constant dense<0.000000e+00> : vector<8x128xf32>
    %29 = tpu.matmul %27, %28, %cst_30 {dimension_numbers = #tpu.dot_dimension_numbers<[1], [0], [0], [1], [0, 0, 1, 1], [], []>} : vector<8x128xf32>, vector<128x128xf32>, vector<8x128xf32> -> vector<8x128xf32>
    %30 = arith.addf %26, %29 : vector<8x128xf32>
    %31 = math.tanh %30 : vector<8x128xf32>
    %c0_31 = arith.constant 0 : index
    %c0_32 = arith.constant 0 : index
    %32 = vector.load %arg5[%c0_31, %c0_32] : memref<8x128xf32, #tpu.memory_space<vmem>>, vector<8x128xf32>
    tpu.vector_store %arg5[%c0_31, %c0_32], %31 {strides = array<i32>} : memref<8x128xf32, #tpu.memory_space<vmem>>, vector<8x128xf32>,
    %c2_33 = arith.constant 2 : index
    %c0_34 = arith.constant 0 : index
    %c0_35 = arith.constant 0 : index
    %33 = vector.load %arg4[%c2_33, %c0_34, %c0_35] : memref<16x8x128xf32, #tpu.memory_space<vmem>>, vector<1x8x128xf32>
    %34 = vector.shape_cast %33 : vector<1x8x128xf32> to vector<8x128xf32>
    %35 = vector.shape_cast %31 : vector<8x128xf32> to vector<1x8x128xf32>
    tpu.vector_store %arg4[%c2_33, %c0_34, %c0_35], %35 {strides = array<i32>} : memref<16x8x128xf32, #tpu.memory_space<vmem>>, vector<1x8x128xf32>,
    %c3 = arith.constant 3 : index
    %c0_36 = arith.constant 0 : index
    %c0_37 = arith.constant 0 : index
    %36 = vector.load %arg1[%c3, %c0_36, %c0_37] : memref<16x8x128xf32, #tpu.memory_space<vmem>>, vector<1x8x128xf32>
    %37 = vector.shape_cast %36 : vector<1x8x128xf32> to vector<8x128xf32>
    %c0_38 = arith.constant 0 : index
    %c0_39 = arith.constant 0 : index
    %38 = vector.load %arg5[%c0_38, %c0_39] : memref<8x128xf32, #tpu.memory_space<vmem>>, vector<8x128xf32>
    %c0_40 = arith.constant 0 : index
    %c0_41 = arith.constant 0 : index
    %39 = vector.load %arg3[%c0_40, %c0_41] : memref<128x128xf32, #tpu.memory_space<vmem>>, vector<128x128xf32>
    %cst_42 = arith.constant dense<0.000000e+00> : vector<8x128xf32>
    %40 = tpu.matmul %38, %39, %cst_42 {dimension_numbers = #tpu.dot_dimension_numbers<[1], [0], [0], [1], [0, 0, 1, 1], [], []>} : vector<8x128xf32>, vector<128x128xf32>, vector<8x128xf32> -> vector<8x128xf32>
    %41 = arith.addf %37, %40 : vector<8x128xf32>
    %42 = math.tanh %41 : vector<8x128xf32>
    %c0_43 = arith.constant 0 : index
    %c0_44 = arith.constant 0 : index
    %43 = vector.load %arg5[%c0_43, %c0_44] : memref<8x128xf32, #tpu.memory_space<vmem>>, vector<8x128xf32>
    tpu.vector_store %arg5[%c0_43, %c0_44], %42 {strides = array<i32>} : memref<8x128xf32, #tpu.memory_space<vmem>>, vector<8x128xf32>,
    %c3_45 = arith.constant 3 : index
    %c0_46 = arith.constant 0 : index
    %c0_47 = arith.constant 0 : index
    %44 = vector.load %arg4[%c3_45, %c0_46, %c0_47] : memref<16x8x128xf32, #tpu.memory_space<vmem>>, vector<1x8x128xf32>
    %45 = vector.shape_cast %44 : vector<1x8x128xf32> to vector<8x128xf32>
    %46 = vector.shape_cast %42 : vector<8x128xf32> to vector<1x8x128xf32>
    tpu.vector_store %arg4[%c3_45, %c0_46, %c0_47], %46 {strides = array<i32>} : memref<16x8x128xf32, #tpu.memory_space<vmem>>, vector<1x8x128xf32>,
    %c4 = arith.constant 4 : index
    %c0_48 = arith.constant 0 : index
    %c0_49 = arith.constant 0 : index
    %47 = vector.load %arg1[%c4, %c0_48, %c0_49] : memref<16x8x128xf32, #tpu.memory_space<vmem>>, vector<1x8x128xf32>
    %48 = vector.shape_cast %47 : vector<1x8x128xf32> to vector<8x128xf32>
    %c0_50 = arith.constant 0 : index
    %c0_51 = arith.constant 0 : index
    %49 = vector.load %arg5[%c0_50, %c0_51] : memref<8x128xf32, #tpu.memory_space<vmem>>, vector<8x128xf32>
    %c0_52 = arith.constant 0 : index
    %c0_53 = arith.constant 0 : index
    %50 = vector.load %arg3[%c0_52, %c0_53] : memref<128x128xf32, #tpu.memory_space<vmem>>, vector<128x128xf32>
    %cst_54 = arith.constant dense<0.000000e+00> : vector<8x128xf32>
    %51 = tpu.matmul %49, %50, %cst_54 {dimension_numbers = #tpu.dot_dimension_numbers<[1], [0], [0], [1], [0, 0, 1, 1], [], []>} : vector<8x128xf32>, vector<128x128xf32>, vector<8x128xf32> -> vector<8x128xf32>
    %52 = arith.addf %48, %51 : vector<8x128xf32>
    %53 = math.tanh %52 : vector<8x128xf32>
    %c0_55 = arith.constant 0 : index
    %c0_56 = arith.constant 0 : index
    %54 = vector.load %arg5[%c0_55, %c0_56] : memref<8x128xf32, #tpu.memory_space<vmem>>, vector<8x128xf32>
    tpu.vector_store %arg5[%c0_55, %c0_56], %53 {strides = array<i32>} : memref<8x128xf32, #tpu.memory_space<vmem>>, vector<8x128xf32>,
    %c4_57 = arith.constant 4 : index
    %c0_58 = arith.constant 0 : index
    %c0_59 = arith.constant 0 : index
    %55 = vector.load %arg4[%c4_57, %c0_58, %c0_59] : memref<16x8x128xf32, #tpu.memory_space<vmem>>, vector<1x8x128xf32>
    %56 = vector.shape_cast %55 : vector<1x8x128xf32> to vector<8x128xf32>
    %57 = vector.shape_cast %53 : vector<8x128xf32> to vector<1x8x128xf32>
    tpu.vector_store %arg4[%c4_57, %c0_58, %c0_59], %57 {strides = array<i32>} : memref<16x8x128xf32, #tpu.memory_space<vmem>>, vector<1x8x128xf32>,
    %c5 = arith.constant 5 : index
    %c0_60 = arith.constant 0 : index
    %c0_61 = arith.constant 0 : index
    %58 = vector.load %arg1[%c5, %c0_60, %c0_61] : memref<16x8x128xf32, #tpu.memory_space<vmem>>, vector<1x8x128xf32>
    %59 = vector.shape_cast %58 : vector<1x8x128xf32> to vector<8x128xf32>
    %c0_62 = arith.constant 0 : index
    %c0_63 = arith.constant 0 : index
    %60 = vector.load %arg5[%c0_62, %c0_63] : memref<8x128xf32, #tpu.memory_space<vmem>>, vector<8x128xf32>
    %c0_64 = arith.constant 0 : index
    %c0_65 = arith.constant 0 : index
    %61 = vector.load %arg3[%c0_64, %c0_65] : memref<128x128xf32, #tpu.memory_space<vmem>>, vector<128x128xf32>
    %cst_66 = arith.constant dense<0.000000e+00> : vector<8x128xf32>
    %62 = tpu.matmul %60, %61, %cst_66 {dimension_numbers = #tpu.dot_dimension_numbers<[1], [0], [0], [1], [0, 0, 1, 1], [], []>} : vector<8x128xf32>, vector<128x128xf32>, vector<8x128xf32> -> vector<8x128xf32>
    %63 = arith.addf %59, %62 : vector<8x128xf32>
    %64 = math.tanh %63 : vector<8x128xf32>
    %c0_67 = arith.constant 0 : index
    %c0_68 = arith.constant 0 : index
    %65 = vector.load %arg5[%c0_67, %c0_68] : memref<8x128xf32, #tpu.memory_space<vmem>>, vector<8x128xf32>
    tpu.vector_store %arg5[%c0_67, %c0_68], %64 {strides = array<i32>} : memref<8x128xf32, #tpu.memory_space<vmem>>, vector<8x128xf32>,
    %c5_69 = arith.constant 5 : index
    %c0_70 = arith.constant 0 : index
    %c0_71 = arith.constant 0 : index
    %66 = vector.load %arg4[%c5_69, %c0_70, %c0_71] : memref<16x8x128xf32, #tpu.memory_space<vmem>>, vector<1x8x128xf32>
    %67 = vector.shape_cast %66 : vector<1x8x128xf32> to vector<8x128xf32>
    %68 = vector.shape_cast %64 : vector<8x128xf32> to vector<1x8x128xf32>
    tpu.vector_store %arg4[%c5_69, %c0_70, %c0_71], %68 {strides = array<i32>} : memref<16x8x128xf32, #tpu.memory_space<vmem>>, vector<1x8x128xf32>,
    %c6 = arith.constant 6 : index
    %c0_72 = arith.constant 0 : index
    %c0_73 = arith.constant 0 : index
    %69 = vector.load %arg1[%c6, %c0_72, %c0_73] : memref<16x8x128xf32, #tpu.memory_space<vmem>>, vector<1x8x128xf32>
    %70 = vector.shape_cast %69 : vector<1x8x128xf32> to vector<8x128xf32>
    %c0_74 = arith.constant 0 : index
    %c0_75 = arith.constant 0 : index
    %71 = vector.load %arg5[%c0_74, %c0_75] : memref<8x128xf32, #tpu.memory_space<vmem>>, vector<8x128xf32>
    %c0_76 = arith.constant 0 : index
    %c0_77 = arith.constant 0 : index
    %72 = vector.load %arg3[%c0_76, %c0_77] : memref<128x128xf32, #tpu.memory_space<vmem>>, vector<128x128xf32>
    %cst_78 = arith.constant dense<0.000000e+00> : vector<8x128xf32>
    %73 = tpu.matmul %71, %72, %cst_78 {dimension_numbers = #tpu.dot_dimension_numbers<[1], [0], [0], [1], [0, 0, 1, 1], [], []>} : vector<8x128xf32>, vector<128x128xf32>, vector<8x128xf32> -> vector<8x128xf32>
    %74 = arith.addf %70, %73 : vector<8x128xf32>
    %75 = math.tanh %74 : vector<8x128xf32>
    %c0_79 = arith.constant 0 : index
    %c0_80 = arith.constant 0 : index
    %76 = vector.load %arg5[%c0_79, %c0_80] : memref<8x128xf32, #tpu.memory_space<vmem>>, vector<8x128xf32>
    tpu.vector_store %arg5[%c0_79, %c0_80], %75 {strides = array<i32>} : memref<8x128xf32, #tpu.memory_space<vmem>>, vector<8x128xf32>,
    %c6_81 = arith.constant 6 : index
    %c0_82 = arith.constant 0 : index
    %c0_83 = arith.constant 0 : index
    %77 = vector.load %arg4[%c6_81, %c0_82, %c0_83] : memref<16x8x128xf32, #tpu.memory_space<vmem>>, vector<1x8x128xf32>
    %78 = vector.shape_cast %77 : vector<1x8x128xf32> to vector<8x128xf32>
    %79 = vector.shape_cast %75 : vector<8x128xf32> to vector<1x8x128xf32>
    tpu.vector_store %arg4[%c6_81, %c0_82, %c0_83], %79 {strides = array<i32>} : memref<16x8x128xf32, #tpu.memory_space<vmem>>, vector<1x8x128xf32>,
    %c7 = arith.constant 7 : index
    %c0_84 = arith.constant 0 : index
    %c0_85 = arith.constant 0 : index
    %80 = vector.load %arg1[%c7, %c0_84, %c0_85] : memref<16x8x128xf32, #tpu.memory_space<vmem>>, vector<1x8x128xf32>
    %81 = vector.shape_cast %80 : vector<1x8x128xf32> to vector<8x128xf32>
    %c0_86 = arith.constant 0 : index
    %c0_87 = arith.constant 0 : index
    %82 = vector.load %arg5[%c0_86, %c0_87] : memref<8x128xf32, #tpu.memory_space<vmem>>, vector<8x128xf32>
    %c0_88 = arith.constant 0 : index
    %c0_89 = arith.constant 0 : index
    %83 = vector.load %arg3[%c0_88, %c0_89] : memref<128x128xf32, #tpu.memory_space<vmem>>, vector<128x128xf32>
    %cst_90 = arith.constant dense<0.000000e+00> : vector<8x128xf32>
    %84 = tpu.matmul %82, %83, %cst_90 {dimension_numbers = #tpu.dot_dimension_numbers<[1], [0], [0], [1], [0, 0, 1, 1], [], []>} : vector<8x128xf32>, vector<128x128xf32>, vector<8x128xf32> -> vector<8x128xf32>
    %85 = arith.addf %81, %84 : vector<8x128xf32>
    %86 = math.tanh %85 : vector<8x128xf32>
    %c0_91 = arith.constant 0 : index
    %c0_92 = arith.constant 0 : index
    %87 = vector.load %arg5[%c0_91, %c0_92] : memref<8x128xf32, #tpu.memory_space<vmem>>, vector<8x128xf32>
    tpu.vector_store %arg5[%c0_91, %c0_92], %86 {strides = array<i32>} : memref<8x128xf32, #tpu.memory_space<vmem>>, vector<8x128xf32>,
    %c7_93 = arith.constant 7 : index
    %c0_94 = arith.constant 0 : index
    %c0_95 = arith.constant 0 : index
    %88 = vector.load %arg4[%c7_93, %c0_94, %c0_95] : memref<16x8x128xf32, #tpu.memory_space<vmem>>, vector<1x8x128xf32>
    %89 = vector.shape_cast %88 : vector<1x8x128xf32> to vector<8x128xf32>
    %90 = vector.shape_cast %86 : vector<8x128xf32> to vector<1x8x128xf32>
    tpu.vector_store %arg4[%c7_93, %c0_94, %c0_95], %90 {strides = array<i32>} : memref<16x8x128xf32, #tpu.memory_space<vmem>>, vector<1x8x128xf32>,
    %c8 = arith.constant 8 : index
    %c0_96 = arith.constant 0 : index
    %c0_97 = arith.constant 0 : index
    %91 = vector.load %arg1[%c8, %c0_96, %c0_97] : memref<16x8x128xf32, #tpu.memory_space<vmem>>, vector<1x8x128xf32>
    %92 = vector.shape_cast %91 : vector<1x8x128xf32> to vector<8x128xf32>
    %c0_98 = arith.constant 0 : index
    %c0_99 = arith.constant 0 : index
    %93 = vector.load %arg5[%c0_98, %c0_99] : memref<8x128xf32, #tpu.memory_space<vmem>>, vector<8x128xf32>
    %c0_100 = arith.constant 0 : index
    %c0_101 = arith.constant 0 : index
    %94 = vector.load %arg3[%c0_100, %c0_101] : memref<128x128xf32, #tpu.memory_space<vmem>>, vector<128x128xf32>
    %cst_102 = arith.constant dense<0.000000e+00> : vector<8x128xf32>
    %95 = tpu.matmul %93, %94, %cst_102 {dimension_numbers = #tpu.dot_dimension_numbers<[1], [0], [0], [1], [0, 0, 1, 1], [], []>} : vector<8x128xf32>, vector<128x128xf32>, vector<8x128xf32> -> vector<8x128xf32>
    %96 = arith.addf %92, %95 : vector<8x128xf32>
    %97 = math.tanh %96 : vector<8x128xf32>
    %c0_103 = arith.constant 0 : index
    %c0_104 = arith.constant 0 : index
    %98 = vector.load %arg5[%c0_103, %c0_104] : memref<8x128xf32, #tpu.memory_space<vmem>>, vector<8x128xf32>
    tpu.vector_store %arg5[%c0_103, %c0_104], %97 {strides = array<i32>} : memref<8x128xf32, #tpu.memory_space<vmem>>, vector<8x128xf32>,
    %c8_105 = arith.constant 8 : index
    %c0_106 = arith.constant 0 : index
    %c0_107 = arith.constant 0 : index
    %99 = vector.load %arg4[%c8_105, %c0_106, %c0_107] : memref<16x8x128xf32, #tpu.memory_space<vmem>>, vector<1x8x128xf32>
    %100 = vector.shape_cast %99 : vector<1x8x128xf32> to vector<8x128xf32>
    %101 = vector.shape_cast %97 : vector<8x128xf32> to vector<1x8x128xf32>
    tpu.vector_store %arg4[%c8_105, %c0_106, %c0_107], %101 {strides = array<i32>} : memref<16x8x128xf32, #tpu.memory_space<vmem>>, vector<1x8x128xf32>,
    %c9 = arith.constant 9 : index
    %c0_108 = arith.constant 0 : index
    %c0_109 = arith.constant 0 : index
    %102 = vector.load %arg1[%c9, %c0_108, %c0_109] : memref<16x8x128xf32, #tpu.memory_space<vmem>>, vector<1x8x128xf32>
    %103 = vector.shape_cast %102 : vector<1x8x128xf32> to vector<8x128xf32>
    %c0_110 = arith.constant 0 : index
    %c0_111 = arith.constant 0 : index
    %104 = vector.load %arg5[%c0_110, %c0_111] : memref<8x128xf32, #tpu.memory_space<vmem>>, vector<8x128xf32>
    %c0_112 = arith.constant 0 : index
    %c0_113 = arith.constant 0 : index
    %105 = vector.load %arg3[%c0_112, %c0_113] : memref<128x128xf32, #tpu.memory_space<vmem>>, vector<128x128xf32>
    %cst_114 = arith.constant dense<0.000000e+00> : vector<8x128xf32>
    %106 = tpu.matmul %104, %105, %cst_114 {dimension_numbers = #tpu.dot_dimension_numbers<[1], [0], [0], [1], [0, 0, 1, 1], [], []>} : vector<8x128xf32>, vector<128x128xf32>, vector<8x128xf32> -> vector<8x128xf32>
    %107 = arith.addf %103, %106 : vector<8x128xf32>
    %108 = math.tanh %107 : vector<8x128xf32>
    %c0_115 = arith.constant 0 : index
    %c0_116 = arith.constant 0 : index
    %109 = vector.load %arg5[%c0_115, %c0_116] : memref<8x128xf32, #tpu.memory_space<vmem>>, vector<8x128xf32>
    tpu.vector_store %arg5[%c0_115, %c0_116], %108 {strides = array<i32>} : memref<8x128xf32, #tpu.memory_space<vmem>>, vector<8x128xf32>,
    %c9_117 = arith.constant 9 : index
    %c0_118 = arith.constant 0 : index
    %c0_119 = arith.constant 0 : index
    %110 = vector.load %arg4[%c9_117, %c0_118, %c0_119] : memref<16x8x128xf32, #tpu.memory_space<vmem>>, vector<1x8x128xf32>
    %111 = vector.shape_cast %110 : vector<1x8x128xf32> to vector<8x128xf32>
    %112 = vector.shape_cast %108 : vector<8x128xf32> to vector<1x8x128xf32>
    tpu.vector_store %arg4[%c9_117, %c0_118, %c0_119], %112 {strides = array<i32>} : memref<16x8x128xf32, #tpu.memory_space<vmem>>, vector<1x8x128xf32>,
    %c10 = arith.constant 10 : index
    %c0_120 = arith.constant 0 : index
    %c0_121 = arith.constant 0 : index
    %113 = vector.load %arg1[%c10, %c0_120, %c0_121] : memref<16x8x128xf32, #tpu.memory_space<vmem>>, vector<1x8x128xf32>
    %114 = vector.shape_cast %113 : vector<1x8x128xf32> to vector<8x128xf32>
    %c0_122 = arith.constant 0 : index
    %c0_123 = arith.constant 0 : index
    %115 = vector.load %arg5[%c0_122, %c0_123] : memref<8x128xf32, #tpu.memory_space<vmem>>, vector<8x128xf32>
    %c0_124 = arith.constant 0 : index
    %c0_125 = arith.constant 0 : index
    %116 = vector.load %arg3[%c0_124, %c0_125] : memref<128x128xf32, #tpu.memory_space<vmem>>, vector<128x128xf32>
    %cst_126 = arith.constant dense<0.000000e+00> : vector<8x128xf32>
    %117 = tpu.matmul %115, %116, %cst_126 {dimension_numbers = #tpu.dot_dimension_numbers<[1], [0], [0], [1], [0, 0, 1, 1], [], []>} : vector<8x128xf32>, vector<128x128xf32>, vector<8x128xf32> -> vector<8x128xf32>
    %118 = arith.addf %114, %117 : vector<8x128xf32>
    %119 = math.tanh %118 : vector<8x128xf32>
    %c0_127 = arith.constant 0 : index
    %c0_128 = arith.constant 0 : index
    %120 = vector.load %arg5[%c0_127, %c0_128] : memref<8x128xf32, #tpu.memory_space<vmem>>, vector<8x128xf32>
    tpu.vector_store %arg5[%c0_127, %c0_128], %119 {strides = array<i32>} : memref<8x128xf32, #tpu.memory_space<vmem>>, vector<8x128xf32>,
    %c10_129 = arith.constant 10 : index
    %c0_130 = arith.constant 0 : index
    %c0_131 = arith.constant 0 : index
    %121 = vector.load %arg4[%c10_129, %c0_130, %c0_131] : memref<16x8x128xf32, #tpu.memory_space<vmem>>, vector<1x8x128xf32>
    %122 = vector.shape_cast %121 : vector<1x8x128xf32> to vector<8x128xf32>
    %123 = vector.shape_cast %119 : vector<8x128xf32> to vector<1x8x128xf32>
    tpu.vector_store %arg4[%c10_129, %c0_130, %c0_131], %123 {strides = array<i32>} : memref<16x8x128xf32, #tpu.memory_space<vmem>>, vector<1x8x128xf32>,
    %c11 = arith.constant 11 : index
    %c0_132 = arith.constant 0 : index
    %c0_133 = arith.constant 0 : index
    %124 = vector.load %arg1[%c11, %c0_132, %c0_133] : memref<16x8x128xf32, #tpu.memory_space<vmem>>, vector<1x8x128xf32>
    %125 = vector.shape_cast %124 : vector<1x8x128xf32> to vector<8x128xf32>
    %c0_134 = arith.constant 0 : index
    %c0_135 = arith.constant 0 : index
    %126 = vector.load %arg5[%c0_134, %c0_135] : memref<8x128xf32, #tpu.memory_space<vmem>>, vector<8x128xf32>
    %c0_136 = arith.constant 0 : index
    %c0_137 = arith.constant 0 : index
    %127 = vector.load %arg3[%c0_136, %c0_137] : memref<128x128xf32, #tpu.memory_space<vmem>>, vector<128x128xf32>
    %cst_138 = arith.constant dense<0.000000e+00> : vector<8x128xf32>
    %128 = tpu.matmul %126, %127, %cst_138 {dimension_numbers = #tpu.dot_dimension_numbers<[1], [0], [0], [1], [0, 0, 1, 1], [], []>} : vector<8x128xf32>, vector<128x128xf32>, vector<8x128xf32> -> vector<8x128xf32>
    %129 = arith.addf %125, %128 : vector<8x128xf32>
    %130 = math.tanh %129 : vector<8x128xf32>
    %c0_139 = arith.constant 0 : index
    %c0_140 = arith.constant 0 : index
    %131 = vector.load %arg5[%c0_139, %c0_140] : memref<8x128xf32, #tpu.memory_space<vmem>>, vector<8x128xf32>
    tpu.vector_store %arg5[%c0_139, %c0_140], %130 {strides = array<i32>} : memref<8x128xf32, #tpu.memory_space<vmem>>, vector<8x128xf32>,
    %c11_141 = arith.constant 11 : index
    %c0_142 = arith.constant 0 : index
    %c0_143 = arith.constant 0 : index
    %132 = vector.load %arg4[%c11_141, %c0_142, %c0_143] : memref<16x8x128xf32, #tpu.memory_space<vmem>>, vector<1x8x128xf32>
    %133 = vector.shape_cast %132 : vector<1x8x128xf32> to vector<8x128xf32>
    %134 = vector.shape_cast %130 : vector<8x128xf32> to vector<1x8x128xf32>
    tpu.vector_store %arg4[%c11_141, %c0_142, %c0_143], %134 {strides = array<i32>} : memref<16x8x128xf32, #tpu.memory_space<vmem>>, vector<1x8x128xf32>,
    %c12 = arith.constant 12 : index
    %c0_144 = arith.constant 0 : index
    %c0_145 = arith.constant 0 : index
    %135 = vector.load %arg1[%c12, %c0_144, %c0_145] : memref<16x8x128xf32, #tpu.memory_space<vmem>>, vector<1x8x128xf32>
    %136 = vector.shape_cast %135 : vector<1x8x128xf32> to vector<8x128xf32>
    %c0_146 = arith.constant 0 : index
    %c0_147 = arith.constant 0 : index
    %137 = vector.load %arg5[%c0_146, %c0_147] : memref<8x128xf32, #tpu.memory_space<vmem>>, vector<8x128xf32>
    %c0_148 = arith.constant 0 : index
    %c0_149 = arith.constant 0 : index
    %138 = vector.load %arg3[%c0_148, %c0_149] : memref<128x128xf32, #tpu.memory_space<vmem>>, vector<128x128xf32>
    %cst_150 = arith.constant dense<0.000000e+00> : vector<8x128xf32>
    %139 = tpu.matmul %137, %138, %cst_150 {dimension_numbers = #tpu.dot_dimension_numbers<[1], [0], [0], [1], [0, 0, 1, 1], [], []>} : vector<8x128xf32>, vector<128x128xf32>, vector<8x128xf32> -> vector<8x128xf32>
    %140 = arith.addf %136, %139 : vector<8x128xf32>
    %141 = math.tanh %140 : vector<8x128xf32>
    %c0_151 = arith.constant 0 : index
    %c0_152 = arith.constant 0 : index
    %142 = vector.load %arg5[%c0_151, %c0_152] : memref<8x128xf32, #tpu.memory_space<vmem>>, vector<8x128xf32>
    tpu.vector_store %arg5[%c0_151, %c0_152], %141 {strides = array<i32>} : memref<8x128xf32, #tpu.memory_space<vmem>>, vector<8x128xf32>,
    %c12_153 = arith.constant 12 : index
    %c0_154 = arith.constant 0 : index
    %c0_155 = arith.constant 0 : index
    %143 = vector.load %arg4[%c12_153, %c0_154, %c0_155] : memref<16x8x128xf32, #tpu.memory_space<vmem>>, vector<1x8x128xf32>
    %144 = vector.shape_cast %143 : vector<1x8x128xf32> to vector<8x128xf32>
    %145 = vector.shape_cast %141 : vector<8x128xf32> to vector<1x8x128xf32>
    tpu.vector_store %arg4[%c12_153, %c0_154, %c0_155], %145 {strides = array<i32>} : memref<16x8x128xf32, #tpu.memory_space<vmem>>, vector<1x8x128xf32>,
    %c13 = arith.constant 13 : index
    %c0_156 = arith.constant 0 : index
    %c0_157 = arith.constant 0 : index
    %146 = vector.load %arg1[%c13, %c0_156, %c0_157] : memref<16x8x128xf32, #tpu.memory_space<vmem>>, vector<1x8x128xf32>
    %147 = vector.shape_cast %146 : vector<1x8x128xf32> to vector<8x128xf32>
    %c0_158 = arith.constant 0 : index
    %c0_159 = arith.constant 0 : index
    %148 = vector.load %arg5[%c0_158, %c0_159] : memref<8x128xf32, #tpu.memory_space<vmem>>, vector<8x128xf32>
    %c0_160 = arith.constant 0 : index
    %c0_161 = arith.constant 0 : index
    %149 = vector.load %arg3[%c0_160, %c0_161] : memref<128x128xf32, #tpu.memory_space<vmem>>, vector<128x128xf32>
    %cst_162 = arith.constant dense<0.000000e+00> : vector<8x128xf32>
    %150 = tpu.matmul %148, %149, %cst_162 {dimension_numbers = #tpu.dot_dimension_numbers<[1], [0], [0], [1], [0, 0, 1, 1], [], []>} : vector<8x128xf32>, vector<128x128xf32>, vector<8x128xf32> -> vector<8x128xf32>
    %151 = arith.addf %147, %150 : vector<8x128xf32>
    %152 = math.tanh %151 : vector<8x128xf32>
    %c0_163 = arith.constant 0 : index
    %c0_164 = arith.constant 0 : index
    %153 = vector.load %arg5[%c0_163, %c0_164] : memref<8x128xf32, #tpu.memory_space<vmem>>, vector<8x128xf32>
    tpu.vector_store %arg5[%c0_163, %c0_164], %152 {strides = array<i32>} : memref<8x128xf32, #tpu.memory_space<vmem>>, vector<8x128xf32>,
    %c13_165 = arith.constant 13 : index
    %c0_166 = arith.constant 0 : index
    %c0_167 = arith.constant 0 : index
    %154 = vector.load %arg4[%c13_165, %c0_166, %c0_167] : memref<16x8x128xf32, #tpu.memory_space<vmem>>, vector<1x8x128xf32>
    %155 = vector.shape_cast %154 : vector<1x8x128xf32> to vector<8x128xf32>
    %156 = vector.shape_cast %152 : vector<8x128xf32> to vector<1x8x128xf32>
    tpu.vector_store %arg4[%c13_165, %c0_166, %c0_167], %156 {strides = array<i32>} : memref<16x8x128xf32, #tpu.memory_space<vmem>>, vector<1x8x128xf32>,
    %c14 = arith.constant 14 : index
    %c0_168 = arith.constant 0 : index
    %c0_169 = arith.constant 0 : index
    %157 = vector.load %arg1[%c14, %c0_168, %c0_169] : memref<16x8x128xf32, #tpu.memory_space<vmem>>, vector<1x8x128xf32>
    %158 = vector.shape_cast %157 : vector<1x8x128xf32> to vector<8x128xf32>
    %c0_170 = arith.constant 0 : index
    %c0_171 = arith.constant 0 : index
    %159 = vector.load %arg5[%c0_170, %c0_171] : memref<8x128xf32, #tpu.memory_space<vmem>>, vector<8x128xf32>
    %c0_172 = arith.constant 0 : index
    %c0_173 = arith.constant 0 : index
    %160 = vector.load %arg3[%c0_172, %c0_173] : memref<128x128xf32, #tpu.memory_space<vmem>>, vector<128x128xf32>
    %cst_174 = arith.constant dense<0.000000e+00> : vector<8x128xf32>
    %161 = tpu.matmul %159, %160, %cst_174 {dimension_numbers = #tpu.dot_dimension_numbers<[1], [0], [0], [1], [0, 0, 1, 1], [], []>} : vector<8x128xf32>, vector<128x128xf32>, vector<8x128xf32> -> vector<8x128xf32>
    %162 = arith.addf %158, %161 : vector<8x128xf32>
    %163 = math.tanh %162 : vector<8x128xf32>
    %c0_175 = arith.constant 0 : index
    %c0_176 = arith.constant 0 : index
    %164 = vector.load %arg5[%c0_175, %c0_176] : memref<8x128xf32, #tpu.memory_space<vmem>>, vector<8x128xf32>
    tpu.vector_store %arg5[%c0_175, %c0_176], %163 {strides = array<i32>} : memref<8x128xf32, #tpu.memory_space<vmem>>, vector<8x128xf32>,
    %c14_177 = arith.constant 14 : index
    %c0_178 = arith.constant 0 : index
    %c0_179 = arith.constant 0 : index
    %165 = vector.load %arg4[%c14_177, %c0_178, %c0_179] : memref<16x8x128xf32, #tpu.memory_space<vmem>>, vector<1x8x128xf32>
    %166 = vector.shape_cast %165 : vector<1x8x128xf32> to vector<8x128xf32>
    %167 = vector.shape_cast %163 : vector<8x128xf32> to vector<1x8x128xf32>
    tpu.vector_store %arg4[%c14_177, %c0_178, %c0_179], %167 {strides = array<i32>} : memref<16x8x128xf32, #tpu.memory_space<vmem>>, vector<1x8x128xf32>,
    %c15 = arith.constant 15 : index
    %c0_180 = arith.constant 0 : index
    %c0_181 = arith.constant 0 : index
    %168 = vector.load %arg1[%c15, %c0_180, %c0_181] : memref<16x8x128xf32, #tpu.memory_space<vmem>>, vector<1x8x128xf32>
    %169 = vector.shape_cast %168 : vector<1x8x128xf32> to vector<8x128xf32>
    %c0_182 = arith.constant 0 : index
    %c0_183 = arith.constant 0 : index
    %170 = vector.load %arg5[%c0_182, %c0_183] : memref<8x128xf32, #tpu.memory_space<vmem>>, vector<8x128xf32>
    %c0_184 = arith.constant 0 : index
    %c0_185 = arith.constant 0 : index
    %171 = vector.load %arg3[%c0_184, %c0_185] : memref<128x128xf32, #tpu.memory_space<vmem>>, vector<128x128xf32>
    %cst_186 = arith.constant dense<0.000000e+00> : vector<8x128xf32>
    %172 = tpu.matmul %170, %171, %cst_186 {dimension_numbers = #tpu.dot_dimension_numbers<[1], [0], [0], [1], [0, 0, 1, 1], [], []>} : vector<8x128xf32>, vector<128x128xf32>, vector<8x128xf32> -> vector<8x128xf32>
    %173 = arith.addf %169, %172 : vector<8x128xf32>
    %174 = math.tanh %173 : vector<8x128xf32>
    %c0_187 = arith.constant 0 : index
    %c0_188 = arith.constant 0 : index
    %175 = vector.load %arg5[%c0_187, %c0_188] : memref<8x128xf32, #tpu.memory_space<vmem>>, vector<8x128xf32>
    tpu.vector_store %arg5[%c0_187, %c0_188], %174 {strides = array<i32>} : memref<8x128xf32, #tpu.memory_space<vmem>>, vector<8x128xf32>,
    %c15_189 = arith.constant 15 : index
    %c0_190 = arith.constant 0 : index
    %c0_191 = arith.constant 0 : index
    %176 = vector.load %arg4[%c15_189, %c0_190, %c0_191] : memref<16x8x128xf32, #tpu.memory_space<vmem>>, vector<1x8x128xf32>
    %177 = vector.shape_cast %176 : vector<1x8x128xf32> to vector<8x128xf32>
    %178 = vector.shape_cast %174 : vector<8x128xf32> to vector<1x8x128xf32>
    tpu.vector_store %arg4[%c15_189, %c0_190, %c0_191], %178 {strides = array<i32>} : memref<16x8x128xf32, #tpu.memory_space<vmem>>, vector<1x8x128xf32>,
    return
  }
  func.func @transform_0(%arg0: i32) -> (i32, i32, i32) {
    %c0_i32 = arith.constant 0 : i32
    %c0_i32_0 = arith.constant 0 : i32
    %c0_i32_1 = arith.constant 0 : i32
    return %arg0, %c0_i32, %c0_i32_0 : i32, i32, i32
  }
  func.func @transform_1(%arg0: i32) -> (i32, i32) {
    %c0_i32 = arith.constant 0 : i32
    %c0_i32_0 = arith.constant 0 : i32
    %c0_i32_1 = arith.constant 0 : i32
    return %c0_i32, %c0_i32_0 : i32, i32
  }
  func.func @transform_2(%arg0: i32) -> (i32, i32) {
    %c0_i32 = arith.constant 0 : i32
    %c0_i32_0 = arith.constant 0 : i32
    %c0_i32_1 = arith.constant 0 : i32
    return %c0_i32, %c0_i32_0 : i32, i32
  }
  func.func @transform_3(%arg0: i32) -> (i32, i32, i32) {
    %c0_i32 = arith.constant 0 : i32
    %c0_i32_0 = arith.constant 0 : i32
    %c0_i32_1 = arith.constant 0 : i32
    return %arg0, %c0_i32, %c0_i32_0 : i32, i32, i32
  }
}

</mosaic_0001>

<llo_original>
// kernel: rnn_model_forward.3
$region0: #{rnn_model_forward.3}
  #allocation0 [shape = 'u32[]', space=smem, size = 0x4, offset = 0x4, fixed_abs, tag = 'smem constant byte address 0x4 - core index']
  #allocation1 [shape = 'u32[144,128]{1,0:T(1,128)}', space=vmem, size = 0x12000, scoped, tag = 'internal scratch']
  %s0 = inlined_call_operand.vmem [shape: f32[128,128], index: 0, kind: input, shape index: {}]
  %s1 = inlined_call_operand.vmem [shape: f32[128,128], index: 1, kind: input, shape index: {}]
  %s2 = inlined_call_operand.vmem [shape: f32[1,128], index: 2, kind: input, shape index: {}]
  %s3 = inlined_call_operand.vmem [shape: f32[128,128], index: 3, kind: output, shape index: {}]
  %s4 = sld [smem:[#allocation0]]
  $region22: #{rnn_model_forward.3} parent=0
    _
  %s6 = ssub.s32 1, %s4
  %s7 = scalar_select 0, %s6, %s4
  // Predicated region
  $region2: #{rnn_model_forward.3} parent=0 // pred_check
    _
  $region3: #{rnn_model_forward.3} parent=0 // pred_check_branch
    %9 = sbr.rel (0) target = $region5
  $region4: #{rnn_model_forward.3} parent=0 // pred_region
    _
  $region5: #{rnn_model_forward.3} parent=0 // pred_fallthru
    _
  // Predicated region
  $region6: #{rnn_model_forward.3} parent=0 // pred_check
    _
  $region7: #{rnn_model_forward.3} parent=0 // pred_check_branch
    %11 = sbr.rel (0) target = $region9
  $region8: #{rnn_model_forward.3} parent=0 // pred_region
    _
  $region9: #{rnn_model_forward.3} parent=0 // pred_fallthru
    _
  // Predicated region
  $region10: #{rnn_model_forward.3} parent=0 // pred_check
    _
  $region11: #{rnn_model_forward.3} parent=0 // pred_check_branch
    %13 = sbr.rel (0) target = $region13
  $region12: #{rnn_model_forward.3} parent=0 // pred_region
    _
  $region13: #{rnn_model_forward.3} parent=0 // pred_fallthru
    _
  %v14 = vld [vmem:[%s0] sm:$0xff]
  %v15 = vld [vmem:[%s0 + $0x8] sm:$0xff]
  %v16 = vld [vmem:[%s0 + $0x10] sm:$0xff]
  %v17 = vld [vmem:[%s0 + $0x18] sm:$0xff]
  %v18 = vld [vmem:[%s0 + $0x20] sm:$0xff]
  %v19 = vld [vmem:[%s0 + $0x28] sm:$0xff]
  %v20 = vld [vmem:[%s0 + $0x30] sm:$0xff]
  %v21 = vld [vmem:[%s0 + $0x38] sm:$0xff]
  %v22 = vld [vmem:[%s0 + $0x40] sm:$0xff]
  %v23 = vld [vmem:[%s0 + $0x48] sm:$0xff]
  %v24 = vld [vmem:[%s0 + $0x50] sm:$0xff]
  %v25 = vld [vmem:[%s0 + $0x58] sm:$0xff]
  %v26 = vld [vmem:[%s0 + $0x60] sm:$0xff]
  %v27 = vld [vmem:[%s0 + $0x68] sm:$0xff]
  %v28 = vld [vmem:[%s0 + $0x70] sm:$0xff]
  %v29 = vld [vmem:[%s0 + $0x78] sm:$0xff]
  %v30 = vld [vmem:[%s1] sm:$0xff]
  %v31 = vld [vmem:[%s1 + $0x8] sm:$0xff]
  %v32 = vld [vmem:[%s1 + $0x10] sm:$0xff]
  %v33 = vld [vmem:[%s1 + $0x18] sm:$0xff]
  %v34 = vld [vmem:[%s1 + $0x20] sm:$0xff]
  %v35 = vld [vmem:[%s1 + $0x28] sm:$0xff]
  %v36 = vld [vmem:[%s1 + $0x30] sm:$0xff]
  %v37 = vld [vmem:[%s1 + $0x38] sm:$0xff]
  %v38 = vld [vmem:[%s1 + $0x40] sm:$0xff]
  %v39 = vld [vmem:[%s1 + $0x48] sm:$0xff]
  %v40 = vld [vmem:[%s1 + $0x50] sm:$0xff]
  %v41 = vld [vmem:[%s1 + $0x58] sm:$0xff]
  %v42 = vld [vmem:[%s1 + $0x60] sm:$0xff]
  %v43 = vld [vmem:[%s1 + $0x68] sm:$0xff]
  %v44 = vld [vmem:[%s1 + $0x70] sm:$0xff]
  %v45 = vld [vmem:[%s1 + $0x78] sm:$0xff]
  %v46 = vld [vmem:[%s2] sm:$0x1]
  %v48 = vlaneseq
  %v49 = vshrl.u32 %v48, 7
  %v50 = vsub.s32 0, %v49
  %v51 = vrot.slane %v46, %v50
  %53 = vmatprep.subr.mxu0 0.0
  %54 = vmatpush1.msra.mxu0 %v30
  %55 = vmatprep.subr.mxu0 0.0
  %56 = vmatpush1.msra.mxu0 %v31
  %57 = vmatprep.subr.mxu0 0.0
  %58 = vmatpush1.msra.mxu0 %v32
  %59 = vmatprep.subr.mxu0 0.0
  %60 = vmatpush1.msra.mxu0 %v33
  %61 = vmatprep.subr.mxu0 0.0
  %62 = vmatpush1.msra.mxu0 %v34
  %63 = vmatprep.subr.mxu0 0.0
  %64 = vmatpush1.msra.mxu0 %v35
  %65 = vmatprep.subr.mxu0 0.0
  %66 = vmatpush1.msra.mxu0 %v36
  %67 = vmatprep.subr.mxu0 0.0
  %68 = vmatpush1.msra.mxu0 %v37
  %69 = vmatprep.subr.mxu0 0.0
  %70 = vmatpush1.msra.mxu0 %v38
  %71 = vmatprep.subr.mxu0 0.0
  %72 = vmatpush1.msra.mxu0 %v39
  %73 = vmatprep.subr.mxu0 0.0
  %74 = vmatpush1.msra.mxu0 %v40
  %75 = vmatprep.subr.mxu0 0.0
  %76 = vmatpush1.msra.mxu0 %v41
  %77 = vmatprep.subr.mxu0 0.0
  %78 = vmatpush1.msra.mxu0 %v42
  %79 = vmatprep.subr.mxu0 0.0
  %80 = vmatpush1.msra.mxu0 %v43
  %81 = vmatprep.subr.mxu0 0.0
  %82 = vmatpush1.msra.mxu0 %v44
  %83 = vmatprep.subr.mxu0 0.0
  %84 = vmatpush1.msra.mxu0 %v45
  %85 = vmatprep.subr.mxu0 0.0
  %86 = vmatpush1.msra.mxu0 0.0
  %87 = vmatprep.subr.mxu0 0.0
  %88 = vmatpush1.msra.mxu0 0.0
  %89 = vmatprep.subr.mxu0 0.0
  %90 = vmatpush1.msra.mxu0 0.0
  %91 = vmatprep.subr.mxu0 0.0
  %92 = vmatpush1.msra.mxu0 0.0
  %93 = vmatprep.subr.mxu0 0.0
  %94 = vmatpush1.msra.mxu0 0.0
  %95 = vmatprep.subr.mxu0 0.0
  %96 = vmatpush1.msra.mxu0 0.0
  %97 = vmatprep.subr.mxu0 0.0
  %98 = vmatpush1.msra.mxu0 0.0
  %99 = vmatprep.subr.mxu0 0.0
  %100 = vmatpush1.msra.mxu0 0.0
  %101 = vmatprep.subr.mxu0 0.0
  %102 = vmatpush1.msra.mxu0 0.0
  %103 = vmatprep.subr.mxu0 0.0
  %104 = vmatpush1.msra.mxu0 0.0
  %105 = vmatprep.subr.mxu0 0.0
  %106 = vmatpush1.msra.mxu0 0.0
  %107 = vmatprep.subr.mxu0 0.0
  %108 = vmatpush1.msra.mxu0 0.0
  %109 = vmatprep.subr.mxu0 0.0
  %110 = vmatpush1.msra.mxu0 0.0
  %111 = vmatprep.subr.mxu0 0.0
  %112 = vmatpush1.msra.mxu0 0.0
  %113 = vmatprep.subr.mxu0 0.0
  %114 = vmatpush1.msra.mxu0 0.0
  %115 = vmatprep.subr.mxu0 0.0
  %116 = vmatpush1.msra.mxu0 0.0
  %117 = vmatprep.mubr.f32.mxu0 0.0
  %118 = vmatmul.mubr.f32.gmra.mrb[0].mxu0 %v14
  %v119 = vpop.f32.mrb[0].mxu0
  %v120 = vadd.f32 %v51, %v119
  %v121 = vpop.f32.mrb[0].mxu0
  %122 = vmatprep.mubr.f32.mxu0 0.0
  %123 = vmatmul.mubr.f32.gmra.mrb[0].mxu0 %v15
  %v124 = vpop.f32.mrb[0].mxu0
  %v125 = vadd.f32 %v51, %v124
  %v126 = vpop.f32.mrb[0].mxu0
  %127 = vmatprep.mubr.f32.mxu0 0.0
  %128 = vmatmul.mubr.f32.gmra.mrb[0].mxu0 %v16
  %v129 = vpop.f32.mrb[0].mxu0
  %v130 = vadd.f32 %v51, %v129
  %v131 = vpop.f32.mrb[0].mxu0
  %132 = vmatprep.mubr.f32.mxu0 0.0
  %133 = vmatmul.mubr.f32.gmra.mrb[0].mxu0 %v17
  %v134 = vpop.f32.mrb[0].mxu0
  %v135 = vadd.f32 %v51, %v134
  %v136 = vpop.f32.mrb[0].mxu0
  %137 = vmatprep.mubr.f32.mxu0 0.0
  %138 = vmatmul.mubr.f32.gmra.mrb[0].mxu0 %v18
  %v139 = vpop.f32.mrb[0].mxu0
  %v140 = vadd.f32 %v51, %v139
  %v141 = vpop.f32.mrb[0].mxu0
  %142 = vmatprep.mubr.f32.mxu0 0.0
  %143 = vmatmul.mubr.f32.gmra.mrb[0].mxu0 %v19
  %v144 = vpop.f32.mrb[0].mxu0
  %v145 = vadd.f32 %v51, %v144
  %v146 = vpop.f32.mrb[0].mxu0
  %147 = vmatprep.mubr.f32.mxu0 0.0
  %148 = vmatmul.mubr.f32.gmra.mrb[0].mxu0 %v20
  %v149 = vpop.f32.mrb[0].mxu0
  %v150 = vadd.f32 %v51, %v149
  %v151 = vpop.f32.mrb[0].mxu0
  %152 = vmatprep.mubr.f32.mxu0 0.0
  %153 = vmatmul.mubr.f32.gmra.mrb[0].mxu0 %v21
  %v154 = vpop.f32.mrb[0].mxu0
  %v155 = vadd.f32 %v51, %v154
  %v156 = vpop.f32.mrb[0].mxu0
  %157 = vmatprep.mubr.f32.mxu0 0.0
  %158 = vmatmul.mubr.f32.gmra.mrb[0].mxu0 %v22
  %v159 = vpop.f32.mrb[0].mxu0
  %v160 = vadd.f32 %v51, %v159
  %v161 = vpop.f32.mrb[0].mxu0
  %162 = vmatprep.mubr.f32.mxu0 0.0
  %163 = vmatmul.mubr.f32.gmra.mrb[0].mxu0 %v23
  %v164 = vpop.f32.mrb[0].mxu0
  %v165 = vadd.f32 %v51, %v164
  %v166 = vpop.f32.mrb[0].mxu0
  %167 = vmatprep.mubr.f32.mxu0 0.0
  %168 = vmatmul.mubr.f32.gmra.mrb[0].mxu0 %v24
  %v169 = vpop.f32.mrb[0].mxu0
  %v170 = vadd.f32 %v51, %v169
  %v171 = vpop.f32.mrb[0].mxu0
  %172 = vmatprep.mubr.f32.mxu0 0.0
  %173 = vmatmul.mubr.f32.gmra.mrb[0].mxu0 %v25
  %v174 = vpop.f32.mrb[0].mxu0
  %v175 = vadd.f32 %v51, %v174
  %v176 = vpop.f32.mrb[0].mxu0
  %177 = vmatprep.mubr.f32.mxu0 0.0
  %178 = vmatmul.mubr.f32.gmra.mrb[0].mxu0 %v26
  %v179 = vpop.f32.mrb[0].mxu0
  %v180 = vadd.f32 %v51, %v179
  %v181 = vpop.f32.mrb[0].mxu0
  %182 = vmatprep.mubr.f32.mxu0 0.0
  %183 = vmatmul.mubr.f32.gmra.mrb[0].mxu0 %v27
  %v184 = vpop.f32.mrb[0].mxu0
  %v185 = vadd.f32 %v51, %v184
  %v186 = vpop.f32.mrb[0].mxu0
  %187 = vmatprep.mubr.f32.mxu0 0.0
  %188 = vmatmul.mubr.f32.gmra.mrb[0].mxu0 %v28
  %v189 = vpop.f32.mrb[0].mxu0
  %v190 = vadd.f32 %v51, %v189
  %v191 = vpop.f32.mrb[0].mxu0
  %192 = vmatprep.mubr.f32.mxu0 0.0
  %193 = vmatmul.mubr.f32.gmra.mrb[0].mxu0 %v29
  %v194 = vpop.f32.mrb[0].mxu0
  %v195 = vadd.f32 %v51, %v194
  %v196 = vpop.f32.mrb[0].mxu0
  %197 = vdwg.mxu0
  %198 = vst [vmem:[%s3] sm:$0xff] %v120
  %199 = vst [vmem:[%s3 + $0x8] sm:$0xff] %v125
  %200 = vst [vmem:[%s3 + $0x10] sm:$0xff] %v130
  %201 = vst [vmem:[%s3 + $0x18] sm:$0xff] %v135
  %202 = vst [vmem:[%s3 + $0x20] sm:$0xff] %v140
  %203 = vst [vmem:[%s3 + $0x28] sm:$0xff] %v145
  %204 = vst [vmem:[%s3 + $0x30] sm:$0xff] %v150
  %205 = vst [vmem:[%s3 + $0x38] sm:$0xff] %v155
  %206 = vst [vmem:[%s3 + $0x40] sm:$0xff] %v160
  %207 = vst [vmem:[%s3 + $0x48] sm:$0xff] %v165
  %208 = vst [vmem:[%s3 + $0x50] sm:$0xff] %v170
  %209 = vst [vmem:[%s3 + $0x58] sm:$0xff] %v175
  %210 = vst [vmem:[%s3 + $0x60] sm:$0xff] %v180
  %211 = vst [vmem:[%s3 + $0x68] sm:$0xff] %v185
  %212 = vst [vmem:[%s3 + $0x70] sm:$0xff] %v190
  %213 = vst [vmem:[%s3 + $0x78] sm:$0xff] %v195
  // Predicated region
  $region14: #{rnn_model_forward.3} parent=0 // pred_check
    _
  $region15: #{rnn_model_forward.3} parent=0 // pred_check_branch
    %215 = sbr.rel (0) target = $region17
  $region16: #{rnn_model_forward.3} parent=0 // pred_region
    _
  $region17: #{rnn_model_forward.3} parent=0 // pred_fallthru
    _
  // Predicated region
  $region18: #{rnn_model_forward.3} parent=0 // pred_check
    _
  $region19: #{rnn_model_forward.3} parent=0 // pred_check_branch
    %217 = sbr.rel (0) target = $region21
  $region20: #{rnn_model_forward.3} parent=0 // pred_region
    _
  $region21: #{rnn_model_forward.3} parent=0 // pred_fallthru
    _

// kernel: rnn_model_forward.2
$region0: #{rnn_model_forward.2}
  #allocation0 [shape = 'u32[]', space=smem, size = 0x4, offset = 0x4, fixed_abs, tag = 'smem constant byte address 0x4 - core index']
  #allocation1 [shape = 'u32[144,128]{1,0:T(1,128)}', space=vmem, size = 0x12000, scoped, tag = 'internal scratch']
  #allocation2 [shape = 'f32[8,128]{1,0:T(8,128)}', space=vmem, size = 0x1000, scoped, tag = 'scratch operand']
  %s0 = inlined_call_operand.vmem [shape: f32[16,8,128], index: 0, kind: input, shape index: {}]
  %s1 = inlined_call_operand.vmem [shape: f32[8,128], index: 1, kind: input, shape index: {}]
  %s2 = inlined_call_operand.vmem [shape: f32[128,128], index: 2, kind: input, shape index: {}]
  %s3 = inlined_call_operand.vmem [shape: f32[16,8,128], index: 3, kind: output, shape index: {}]
  %s4 = sld [smem:[#allocation0]]
  $region26: #{rnn_model_forward.2} parent=0
    _
  %s6 = ssub.s32 1, %s4
  %s7 = scalar_select 0, %s6, %s4
  // Predicated region
  $region2: #{rnn_model_forward.2} parent=0 // pred_check
    _
  $region3: #{rnn_model_forward.2} parent=0 // pred_check_branch
    %9 = sbr.rel (0) target = $region5
  $region4: #{rnn_model_forward.2} parent=0 // pred_region
    _
  $region5: #{rnn_model_forward.2} parent=0 // pred_fallthru
    _
  // Predicated region
  $region6: #{rnn_model_forward.2} parent=0 // pred_check
    _
  $region7: #{rnn_model_forward.2} parent=0 // pred_check_branch
    %11 = sbr.rel (0) target = $region9
  $region8: #{rnn_model_forward.2} parent=0 // pred_region
    _
  $region9: #{rnn_model_forward.2} parent=0 // pred_fallthru
    _
  // Predicated region
  $region10: #{rnn_model_forward.2} parent=0 // pred_check
    _
  $region11: #{rnn_model_forward.2} parent=0 // pred_check_branch
    %13 = sbr.rel (0) target = $region13
  $region12: #{rnn_model_forward.2} parent=0 // pred_region
    _
  $region13: #{rnn_model_forward.2} parent=0 // pred_fallthru
    _
  %p14 = scmp.eq.s32.totalorder 0, 0
  // Predicated region
  $region14: #{rnn_model_forward.2} parent=0 // pred_check
    %p15 = pneg %p14
  $region15: #{rnn_model_forward.2} parent=0 // pred_check_branch
    %17 = sbr.rel (%p15) target = $region17
  $region16: #{rnn_model_forward.2} parent=0 // pred_region
    %v18 = vld [vmem:[%s1] sm:$0xff]
    %19 = vst [vmem:[#allocation2] sm:$0xff] %v18
  $region17: #{rnn_model_forward.2} parent=0 // pred_fallthru
    _
  %v20 = vld [vmem:[%s0] sm:$0xff]
  %v21 = vld [vmem:[#allocation2] sm:$0xff]
  %v22 = vld [vmem:[%s2] sm:$0xff]
  %v23 = vld [vmem:[%s2 + $0x8] sm:$0xff]
  %v24 = vld [vmem:[%s2 + $0x10] sm:$0xff]
  %v25 = vld [vmem:[%s2 + $0x18] sm:$0xff]
  %v26 = vld [vmem:[%s2 + $0x20] sm:$0xff]
  %v27 = vld [vmem:[%s2 + $0x28] sm:$0xff]
  %v28 = vld [vmem:[%s2 + $0x30] sm:$0xff]
  %v29 = vld [vmem:[%s2 + $0x38] sm:$0xff]
  %v30 = vld [vmem:[%s2 + $0x40] sm:$0xff]
  %v31 = vld [vmem:[%s2 + $0x48] sm:$0xff]
  %v32 = vld [vmem:[%s2 + $0x50] sm:$0xff]
  %v33 = vld [vmem:[%s2 + $0x58] sm:$0xff]
  %v34 = vld [vmem:[%s2 + $0x60] sm:$0xff]
  %v35 = vld [vmem:[%s2 + $0x68] sm:$0xff]
  %v36 = vld [vmem:[%s2 + $0x70] sm:$0xff]
  %v37 = vld [vmem:[%s2 + $0x78] sm:$0xff]
  %38 = vmatprep.subr.mxu0 0.0
  %39 = vmatpush1.msra.mxu0 %v22
  %40 = vmatprep.subr.mxu0 0.0
  %41 = vmatpush1.msra.mxu0 %v23
  %42 = vmatprep.subr.mxu0 0.0
  %43 = vmatpush1.msra.mxu0 %v24
  %44 = vmatprep.subr.mxu0 0.0
  %45 = vmatpush1.msra.mxu0 %v25
  %46 = vmatprep.subr.mxu0 0.0
  %47 = vmatpush1.msra.mxu0 %v26
  %48 = vmatprep.subr.mxu0 0.0
  %49 = vmatpush1.msra.mxu0 %v27
  %50 = vmatprep.subr.mxu0 0.0
  %51 = vmatpush1.msra.mxu0 %v28
  %52 = vmatprep.subr.mxu0 0.0
  %53 = vmatpush1.msra.mxu0 %v29
  %54 = vmatprep.subr.mxu0 0.0
  %55 = vmatpush1.msra.mxu0 %v30
  %56 = vmatprep.subr.mxu0 0.0
  %57 = vmatpush1.msra.mxu0 %v31
  %58 = vmatprep.subr.mxu0 0.0
  %59 = vmatpush1.msra.mxu0 %v32
  %60 = vmatprep.subr.mxu0 0.0
  %61 = vmatpush1.msra.mxu0 %v33
  %62 = vmatprep.subr.mxu0 0.0
  %63 = vmatpush1.msra.mxu0 %v34
  %64 = vmatprep.subr.mxu0 0.0
  %65 = vmatpush1.msra.mxu0 %v35
  %66 = vmatprep.subr.mxu0 0.0
  %67 = vmatpush1.msra.mxu0 %v36
  %68 = vmatprep.subr.mxu0 0.0
  %69 = vmatpush1.msra.mxu0 %v37
  %70 = vmatprep.subr.mxu0 0.0
  %71 = vmatpush1.msra.mxu0 0.0
  %72 = vmatprep.subr.mxu0 0.0
  %73 = vmatpush1.msra.mxu0 0.0
  %74 = vmatprep.subr.mxu0 0.0
  %75 = vmatpush1.msra.mxu0 0.0
  %76 = vmatprep.subr.mxu0 0.0
  %77 = vmatpush1.msra.mxu0 0.0
  %78 = vmatprep.subr.mxu0 0.0
  %79 = vmatpush1.msra.mxu0 0.0
  %80 = vmatprep.subr.mxu0 0.0
  %81 = vmatpush1.msra.mxu0 0.0
  %82 = vmatprep.subr.mxu0 0.0
  %83 = vmatpush1.msra.mxu0 0.0
  %84 = vmatprep.subr.mxu0 0.0
  %85 = vmatpush1.msra.mxu0 0.0
  %86 = vmatprep.subr.mxu0 0.0
  %87 = vmatpush1.msra.mxu0 0.0
  %88 = vmatprep.subr.mxu0 0.0
  %89 = vmatpush1.msra.mxu0 0.0
  %90 = vmatprep.subr.mxu0 0.0
  %91 = vmatpush1.msra.mxu0 0.0
  %92 = vmatprep.subr.mxu0 0.0
  %93 = vmatpush1.msra.mxu0 0.0
  %94 = vmatprep.subr.mxu0 0.0
  %95 = vmatpush1.msra.mxu0 0.0
  %96 = vmatprep.subr.mxu0 0.0
  %97 = vmatpush1.msra.mxu0 0.0
  %98 = vmatprep.subr.mxu0 0.0
  %99 = vmatpush1.msra.mxu0 0.0
  %100 = vmatprep.subr.mxu0 0.0
  %101 = vmatpush1.msra.mxu0 0.0
  %102 = vmatprep.mubr.f32.mxu0 0.0
  %103 = vmatmul.mubr.f32.gmra.mrb[0].mxu0 %v21
  %v104 = vpop.f32.mrb[0].mxu0
  %v105 = vadd.f32 0.0, %v104
  %v106 = vpop.f32.mrb[0].mxu0
  %107 = vdwg.mxu0
  %v108 = vadd.f32 %v20, %v105
  %v109 = vtanh.pop %v108
  %110 = vst [vmem:[#allocation2] sm:$0xff] %v109
  %111 = vst [vmem:[%s3] sm:$0xff] %v109
  %s112 = scalar_lea.vmem %s0, 8
  %v113 = vld [vmem:[%s112] sm:$0xff]
  %v114 = vld [vmem:[#allocation2] sm:$0xff]
  %v115 = vld [vmem:[%s2] sm:$0xff]
  %v116 = vld [vmem:[%s2 + $0x8] sm:$0xff]
  %v117 = vld [vmem:[%s2 + $0x10] sm:$0xff]
  %v118 = vld [vmem:[%s2 + $0x18] sm:$0xff]
  %v119 = vld [vmem:[%s2 + $0x20] sm:$0xff]
  %v120 = vld [vmem:[%s2 + $0x28] sm:$0xff]
  %v121 = vld [vmem:[%s2 + $0x30] sm:$0xff]
  %v122 = vld [vmem:[%s2 + $0x38] sm:$0xff]
  %v123 = vld [vmem:[%s2 + $0x40] sm:$0xff]
  %v124 = vld [vmem:[%s2 + $0x48] sm:$0xff]
  %v125 = vld [vmem:[%s2 + $0x50] sm:$0xff]
  %v126 = vld [vmem:[%s2 + $0x58] sm:$0xff]
  %v127 = vld [vmem:[%s2 + $0x60] sm:$0xff]
  %v128 = vld [vmem:[%s2 + $0x68] sm:$0xff]
  %v129 = vld [vmem:[%s2 + $0x70] sm:$0xff]
  %v130 = vld [vmem:[%s2 + $0x78] sm:$0xff]
  %131 = vmatprep.subr.mxu0 0.0
  %132 = vmatpush1.msra.mxu0 %v115
  %133 = vmatprep.subr.mxu0 0.0
  %134 = vmatpush1.msra.mxu0 %v116
  %135 = vmatprep.subr.mxu0 0.0
  %136 = vmatpush1.msra.mxu0 %v117
  %137 = vmatprep.subr.mxu0 0.0
  %138 = vmatpush1.msra.mxu0 %v118
  %139 = vmatprep.subr.mxu0 0.0
  %140 = vmatpush1.msra.mxu0 %v119
  %141 = vmatprep.subr.mxu0 0.0
  %142 = vmatpush1.msra.mxu0 %v120
  %143 = vmatprep.subr.mxu0 0.0
  %144 = vmatpush1.msra.mxu0 %v121
  %145 = vmatprep.subr.mxu0 0.0
  %146 = vmatpush1.msra.mxu0 %v122
  %147 = vmatprep.subr.mxu0 0.0
  %148 = vmatpush1.msra.mxu0 %v123
  %149 = vmatprep.subr.mxu0 0.0
  %150 = vmatpush1.msra.mxu0 %v124
  %151 = vmatprep.subr.mxu0 0.0
  %152 = vmatpush1.msra.mxu0 %v125
  %153 = vmatprep.subr.mxu0 0.0
  %154 = vmatpush1.msra.mxu0 %v126
  %155 = vmatprep.subr.mxu0 0.0
  %156 = vmatpush1.msra.mxu0 %v127
  %157 = vmatprep.subr.mxu0 0.0
  %158 = vmatpush1.msra.mxu0 %v128
  %159 = vmatprep.subr.mxu0 0.0
  %160 = vmatpush1.msra.mxu0 %v129
  %161 = vmatprep.subr.mxu0 0.0
  %162 = vmatpush1.msra.mxu0 %v130
  %163 = vmatprep.subr.mxu0 0.0
  %164 = vmatpush1.msra.mxu0 0.0
  %165 = vmatprep.subr.mxu0 0.0
  %166 = vmatpush1.msra.mxu0 0.0
  %167 = vmatprep.subr.mxu0 0.0
  %168 = vmatpush1.msra.mxu0 0.0
  %169 = vmatprep.subr.mxu0 0.0
  %170 = vmatpush1.msra.mxu0 0.0
  %171 = vmatprep.subr.mxu0 0.0
  %172 = vmatpush1.msra.mxu0 0.0
  %173 = vmatprep.subr.mxu0 0.0
  %174 = vmatpush1.msra.mxu0 0.0
  %175 = vmatprep.subr.mxu0 0.0
  %176 = vmatpush1.msra.mxu0 0.0
  %177 = vmatprep.subr.mxu0 0.0
  %178 = vmatpush1.msra.mxu0 0.0
  %179 = vmatprep.subr.mxu0 0.0
  %180 = vmatpush1.msra.mxu0 0.0
  %181 = vmatprep.subr.mxu0 0.0
  %182 = vmatpush1.msra.mxu0 0.0
  %183 = vmatprep.subr.mxu0 0.0
  %184 = vmatpush1.msra.mxu0 0.0
  %185 = vmatprep.subr.mxu0 0.0
  %186 = vmatpush1.msra.mxu0 0.0
  %187 = vmatprep.subr.mxu0 0.0
  %188 = vmatpush1.msra.mxu0 0.0
  %189 = vmatprep.subr.mxu0 0.0
  %190 = vmatpush1.msra.mxu0 0.0
  %191 = vmatprep.subr.mxu0 0.0
  %192 = vmatpush1.msra.mxu0 0.0
  %193 = vmatprep.subr.mxu0 0.0
  %194 = vmatpush1.msra.mxu0 0.0
  %195 = vmatprep.mubr.f32.mxu0 0.0
  %196 = vmatmul.mubr.f32.gmra.mrb[0].mxu0 %v114
  %v197 = vpop.f32.mrb[0].mxu0
  %v198 = vadd.f32 0.0, %v197
  %v199 = vpop.f32.mrb[0].mxu0
  %200 = vdwg.mxu0
  %v201 = vadd.f32 %v113, %v198
  %v202 = vtanh.pop %v201
  %203 = vst [vmem:[#allocation2] sm:$0xff] %v202
  %s204 = scalar_lea.vmem %s3, 8
  %205 = vst [vmem:[%s204] sm:$0xff] %v202
  %s206 = scalar_lea.vmem %s0, 16
  %v207 = vld [vmem:[%s206] sm:$0xff]
  %v208 = vld [vmem:[#allocation2] sm:$0xff]
  %v209 = vld [vmem:[%s2] sm:$0xff]
  %v210 = vld [vmem:[%s2 + $0x8] sm:$0xff]
  %v211 = vld [vmem:[%s2 + $0x10] sm:$0xff]
  %v212 = vld [vmem:[%s2 + $0x18] sm:$0xff]
  %v213 = vld [vmem:[%s2 + $0x20] sm:$0xff]
  %v214 = vld [vmem:[%s2 + $0x28] sm:$0xff]
  %v215 = vld [vmem:[%s2 + $0x30] sm:$0xff]
  %v216 = vld [vmem:[%s2 + $0x38] sm:$0xff]
  %v217 = vld [vmem:[%s2 + $0x40] sm:$0xff]
  %v218 = vld [vmem:[%s2 + $0x48] sm:$0xff]
  %v219 = vld [vmem:[%s2 + $0x50] sm:$0xff]
  %v220 = vld [vmem:[%s2 + $0x58] sm:$0xff]
  %v221 = vld [vmem:[%s2 + $0x60] sm:$0xff]
  %v222 = vld [vmem:[%s2 + $0x68] sm:$0xff]
  %v223 = vld [vmem:[%s2 + $0x70] sm:$0xff]
  %v224 = vld [vmem:[%s2 + $0x78] sm:$0xff]
  %225 = vmatprep.subr.mxu0 0.0
  %226 = vmatpush1.msra.mxu0 %v209
  %227 = vmatprep.subr.mxu0 0.0
  %228 = vmatpush1.msra.mxu0 %v210
  %229 = vmatprep.subr.mxu0 0.0
  %230 = vmatpush1.msra.mxu0 %v211
  %231 = vmatprep.subr.mxu0 0.0
  %232 = vmatpush1.msra.mxu0 %v212
  %233 = vmatprep.subr.mxu0 0.0
  %234 = vmatpush1.msra.mxu0 %v213
  %235 = vmatprep.subr.mxu0 0.0
  %236 = vmatpush1.msra.mxu0 %v214
  %237 = vmatprep.subr.mxu0 0.0
  %238 = vmatpush1.msra.mxu0 %v215
  %239 = vmatprep.subr.mxu0 0.0
  %240 = vmatpush1.msra.mxu0 %v216
  %241 = vmatprep.subr.mxu0 0.0
  %242 = vmatpush1.msra.mxu0 %v217
  %243 = vmatprep.subr.mxu0 0.0
  %244 = vmatpush1.msra.mxu0 %v218
  %245 = vmatprep.subr.mxu0 0.0
  %246 = vmatpush1.msra.mxu0 %v219
  %247 = vmatprep.subr.mxu0 0.0
  %248 = vmatpush1.msra.mxu0 %v220
  %249 = vmatprep.subr.mxu0 0.0
  %250 = vmatpush1.msra.mxu0 %v221
  %251 = vmatprep.subr.mxu0 0.0
  %252 = vmatpush1.msra.mxu0 %v222
  %253 = vmatprep.subr.mxu0 0.0
  %254 = vmatpush1.msra.mxu0 %v223
  %255 = vmatprep.subr.mxu0 0.0
  %256 = vmatpush1.msra.mxu0 %v224
  %257 = vmatprep.subr.mxu0 0.0
  %258 = vmatpush1.msra.mxu0 0.0
  %259 = vmatprep.subr.mxu0 0.0
  %260 = vmatpush1.msra.mxu0 0.0
  %261 = vmatprep.subr.mxu0 0.0
  %262 = vmatpush1.msra.mxu0 0.0
  %263 = vmatprep.subr.mxu0 0.0
  %264 = vmatpush1.msra.mxu0 0.0
  %265 = vmatprep.subr.mxu0 0.0
  %266 = vmatpush1.msra.mxu0 0.0
  %267 = vmatprep.subr.mxu0 0.0
  %268 = vmatpush1.msra.mxu0 0.0
  %269 = vmatprep.subr.mxu0 0.0
  %270 = vmatpush1.msra.mxu0 0.0
  %271 = vmatprep.subr.mxu0 0.0
  %272 = vmatpush1.msra.mxu0 0.0
  %273 = vmatprep.subr.mxu0 0.0
  %274 = vmatpush1.msra.mxu0 0.0
  %275 = vmatprep.subr.mxu0 0.0
  %276 = vmatpush1.msra.mxu0 0.0
  %277 = vmatprep.subr.mxu0 0.0
  %278 = vmatpush1.msra.mxu0 0.0
  %279 = vmatprep.subr.mxu0 0.0
  %280 = vmatpush1.msra.mxu0 0.0
  %281 = vmatprep.subr.mxu0 0.0
  %282 = vmatpush1.msra.mxu0 0.0
  %283 = vmatprep.subr.mxu0 0.0
  %284 = vmatpush1.msra.mxu0 0.0
  %285 = vmatprep.subr.mxu0 0.0
  %286 = vmatpush1.msra.mxu0 0.0
  %287 = vmatprep.subr.mxu0 0.0
  %288 = vmatpush1.msra.mxu0 0.0
  %289 = vmatprep.mubr.f32.mxu0 0.0
  %290 = vmatmul.mubr.f32.gmra.mrb[0].mxu0 %v208
  %v291 = vpop.f32.mrb[0].mxu0
  %v292 = vadd.f32 0.0, %v291
  %v293 = vpop.f32.mrb[0].mxu0
  %294 = vdwg.mxu0
  %v295 = vadd.f32 %v207, %v292
  %v296 = vtanh.pop %v295
  %297 = vst [vmem:[#allocation2] sm:$0xff] %v296
  %s298 = scalar_lea.vmem %s3, 16
  %299 = vst [vmem:[%s298] sm:$0xff] %v296
  %s300 = scalar_lea.vmem %s0, 24
  %v301 = vld [vmem:[%s300] sm:$0xff]
  %v302 = vld [vmem:[#allocation2] sm:$0xff]
  %v303 = vld [vmem:[%s2] sm:$0xff]
  %v304 = vld [vmem:[%s2 + $0x8] sm:$0xff]
  %v305 = vld [vmem:[%s2 + $0x10] sm:$0xff]
  %v306 = vld [vmem:[%s2 + $0x18] sm:$0xff]
  %v307 = vld [vmem:[%s2 + $0x20] sm:$0xff]
  %v308 = vld [vmem:[%s2 + $0x28] sm:$0xff]
  %v309 = vld [vmem:[%s2 + $0x30] sm:$0xff]
  %v310 = vld [vmem:[%s2 + $0x38] sm:$0xff]
  %v311 = vld [vmem:[%s2 + $0x40] sm:$0xff]
  %v312 = vld [vmem:[%s2 + $0x48] sm:$0xff]
  %v313 = vld [vmem:[%s2 + $0x50] sm:$0xff]
  %v314 = vld [vmem:[%s2 + $0x58] sm:$0xff]
  %v315 = vld [vmem:[%s2 + $0x60] sm:$0xff]
  %v316 = vld [vmem:[%s2 + $0x68] sm:$0xff]
  %v317 = vld [vmem:[%s2 + $0x70] sm:$0xff]
  %v318 = vld [vmem:[%s2 + $0x78] sm:$0xff]
  %319 = vmatprep.subr.mxu0 0.0
  %320 = vmatpush1.msra.mxu0 %v303
  %321 = vmatprep.subr.mxu0 0.0
  %322 = vmatpush1.msra.mxu0 %v304
  %323 = vmatprep.subr.mxu0 0.0
  %324 = vmatpush1.msra.mxu0 %v305
  %325 = vmatprep.subr.mxu0 0.0
  %326 = vmatpush1.msra.mxu0 %v306
  %327 = vmatprep.subr.mxu0 0.0
  %328 = vmatpush1.msra.mxu0 %v307
  %329 = vmatprep.subr.mxu0 0.0
  %330 = vmatpush1.msra.mxu0 %v308
  %331 = vmatprep.subr.mxu0 0.0
  %332 = vmatpush1.msra.mxu0 %v309
  %333 = vmatprep.subr.mxu0 0.0
  %334 = vmatpush1.msra.mxu0 %v310
  %335 = vmatprep.subr.mxu0 0.0
  %336 = vmatpush1.msra.mxu0 %v311
  %337 = vmatprep.subr.mxu0 0.0
  %338 = vmatpush1.msra.mxu0 %v312
  %339 = vmatprep.subr.mxu0 0.0
  %340 = vmatpush1.msra.mxu0 %v313
  %341 = vmatprep.subr.mxu0 0.0
  %342 = vmatpush1.msra.mxu0 %v314
  %343 = vmatprep.subr.mxu0 0.0
  %344 = vmatpush1.msra.mxu0 %v315
  %345 = vmatprep.subr.mxu0 0.0
  %346 = vmatpush1.msra.mxu0 %v316
  %347 = vmatprep.subr.mxu0 0.0
  %348 = vmatpush1.msra.mxu0 %v317
  %349 = vmatprep.subr.mxu0 0.0
  %350 = vmatpush1.msra.mxu0 %v318
  %351 = vmatprep.subr.mxu0 0.0
  %352 = vmatpush1.msra.mxu0 0.0
  %353 = vmatprep.subr.mxu0 0.0
  %354 = vmatpush1.msra.mxu0 0.0
  %355 = vmatprep.subr.mxu0 0.0
  %356 = vmatpush1.msra.mxu0 0.0
  %357 = vmatprep.subr.mxu0 0.0
  %358 = vmatpush1.msra.mxu0 0.0
  %359 = vmatprep.subr.mxu0 0.0
  %360 = vmatpush1.msra.mxu0 0.0
  %361 = vmatprep.subr.mxu0 0.0
  %362 = vmatpush1.msra.mxu0 0.0
  %363 = vmatprep.subr.mxu0 0.0
  %364 = vmatpush1.msra.mxu0 0.0
  %365 = vmatprep.subr.mxu0 0.0
  %366 = vmatpush1.msra.mxu0 0.0
  %367 = vmatprep.subr.mxu0 0.0
  %368 = vmatpush1.msra.mxu0 0.0
  %369 = vmatprep.subr.mxu0 0.0
  %370 = vmatpush1.msra.mxu0 0.0
  %371 = vmatprep.subr.mxu0 0.0
  %372 = vmatpush1.msra.mxu0 0.0
  %373 = vmatprep.subr.mxu0 0.0
  %374 = vmatpush1.msra.mxu0 0.0
  %375 = vmatprep.subr.mxu0 0.0
  %376 = vmatpush1.msra.mxu0 0.0
  %377 = vmatprep.subr.mxu0 0.0
  %378 = vmatpush1.msra.mxu0 0.0
  %379 = vmatprep.subr.mxu0 0.0
  %380 = vmatpush1.msra.mxu0 0.0
  %381 = vmatprep.subr.mxu0 0.0
  %382 = vmatpush1.msra.mxu0 0.0
  %383 = vmatprep.mubr.f32.mxu0 0.0
  %384 = vmatmul.mubr.f32.gmra.mrb[0].mxu0 %v302
  %v385 = vpop.f32.mrb[0].mxu0
  %v386 = vadd.f32 0.0, %v385
  %v387 = vpop.f32.mrb[0].mxu0
  %388 = vdwg.mxu0
  %v389 = vadd.f32 %v301, %v386
  %v390 = vtanh.pop %v389
  %391 = vst [vmem:[#allocation2] sm:$0xff] %v390
  %s392 = scalar_lea.vmem %s3, 24
  %393 = vst [vmem:[%s392] sm:$0xff] %v390
  %s394 = scalar_lea.vmem %s0, 32
  %v395 = vld [vmem:[%s394] sm:$0xff]
  %v396 = vld [vmem:[#allocation2] sm:$0xff]
  %v397 = vld [vmem:[%s2] sm:$0xff]
  %v398 = vld [vmem:[%s2 + $0x8] sm:$0xff]
  %v399 = vld [vmem:[%s2 + $0x10] sm:$0xff]
  %v400 = vld [vmem:[%s2 + $0x18] sm:$0xff]
  %v401 = vld [vmem:[%s2 + $0x20] sm:$0xff]
  %v402 = vld [vmem:[%s2 + $0x28] sm:$0xff]
  %v403 = vld [vmem:[%s2 + $0x30] sm:$0xff]
  %v404 = vld [vmem:[%s2 + $0x38] sm:$0xff]
  %v405 = vld [vmem:[%s2 + $0x40] sm:$0xff]
  %v406 = vld [vmem:[%s2 + $0x48] sm:$0xff]
  %v407 = vld [vmem:[%s2 + $0x50] sm:$0xff]
  %v408 = vld [vmem:[%s2 + $0x58] sm:$0xff]
  %v409 = vld [vmem:[%s2 + $0x60] sm:$0xff]
  %v410 = vld [vmem:[%s2 + $0x68] sm:$0xff]
  %v411 = vld [vmem:[%s2 + $0x70] sm:$0xff]
  %v412 = vld [vmem:[%s2 + $0x78] sm:$0xff]
  %413 = vmatprep.subr.mxu0 0.0
  %414 = vmatpush1.msra.mxu0 %v397
  %415 = vmatprep.subr.mxu0 0.0
  %416 = vmatpush1.msra.mxu0 %v398
  %417 = vmatprep.subr.mxu0 0.0
  %418 = vmatpush1.msra.mxu0 %v399
  %419 = vmatprep.subr.mxu0 0.0
  %420 = vmatpush1.msra.mxu0 %v400
  %421 = vmatprep.subr.mxu0 0.0
  %422 = vmatpush1.msra.mxu0 %v401
  %423 = vmatprep.subr.mxu0 0.0
  %424 = vmatpush1.msra.mxu0 %v402
  %425 = vmatprep.subr.mxu0 0.0
  %426 = vmatpush1.msra.mxu0 %v403
  %427 = vmatprep.subr.mxu0 0.0
  %428 = vmatpush1.msra.mxu0 %v404
  %429 = vmatprep.subr.mxu0 0.0
  %430 = vmatpush1.msra.mxu0 %v405
  %431 = vmatprep.subr.mxu0 0.0
  %432 = vmatpush1.msra.mxu0 %v406
  %433 = vmatprep.subr.mxu0 0.0
  %434 = vmatpush1.msra.mxu0 %v407
  %435 = vmatprep.subr.mxu0 0.0
  %436 = vmatpush1.msra.mxu0 %v408
  %437 = vmatprep.subr.mxu0 0.0
  %438 = vmatpush1.msra.mxu0 %v409
  %439 = vmatprep.subr.mxu0 0.0
  %440 = vmatpush1.msra.mxu0 %v410
  %441 = vmatprep.subr.mxu0 0.0
  %442 = vmatpush1.msra.mxu0 %v411
  %443 = vmatprep.subr.mxu0 0.0
  %444 = vmatpush1.msra.mxu0 %v412
  %445 = vmatprep.subr.mxu0 0.0
  %446 = vmatpush1.msra.mxu0 0.0
  %447 = vmatprep.subr.mxu0 0.0
  %448 = vmatpush1.msra.mxu0 0.0
  %449 = vmatprep.subr.mxu0 0.0
  %450 = vmatpush1.msra.mxu0 0.0
  %451 = vmatprep.subr.mxu0 0.0
  %452 = vmatpush1.msra.mxu0 0.0
  %453 = vmatprep.subr.mxu0 0.0
  %454 = vmatpush1.msra.mxu0 0.0
  %455 = vmatprep.subr.mxu0 0.0
  %456 = vmatpush1.msra.mxu0 0.0
  %457 = vmatprep.subr.mxu0 0.0
  %458 = vmatpush1.msra.mxu0 0.0
  %459 = vmatprep.subr.mxu0 0.0
  %460 = vmatpush1.msra.mxu0 0.0
  %461 = vmatprep.subr.mxu0 0.0
  %462 = vmatpush1.msra.mxu0 0.0
  %463 = vmatprep.subr.mxu0 0.0
  %464 = vmatpush1.msra.mxu0 0.0
  %465 = vmatprep.subr.mxu0 0.0
  %466 = vmatpush1.msra.mxu0 0.0
  %467 = vmatprep.subr.mxu0 0.0
  %468 = vmatpush1.msra.mxu0 0.0
  %469 = vmatprep.subr.mxu0 0.0
  %470 = vmatpush1.msra.mxu0 0.0
  %471 = vmatprep.subr.mxu0 0.0
  %472 = vmatpush1.msra.mxu0 0.0
  %473 = vmatprep.subr.mxu0 0.0
  %474 = vmatpush1.msra.mxu0 0.0
  %475 = vmatprep.subr.mxu0 0.0
  %476 = vmatpush1.msra.mxu0 0.0
  %477 = vmatprep.mubr.f32.mxu0 0.0
  %478 = vmatmul.mubr.f32.gmra.mrb[0].mxu0 %v396
  %v479 = vpop.f32.mrb[0].mxu0
  %v480 = vadd.f32 0.0, %v479
  %v481 = vpop.f32.mrb[0].mxu0
  %482 = vdwg.mxu0
  %v483 = vadd.f32 %v395, %v480
  %v484 = vtanh.pop %v483
  %485 = vst [vmem:[#allocation2] sm:$0xff] %v484
  %s486 = scalar_lea.vmem %s3, 32
  %487 = vst [vmem:[%s486] sm:$0xff] %v484
  %s488 = scalar_lea.vmem %s0, 40
  %v489 = vld [vmem:[%s488] sm:$0xff]
  %v490 = vld [vmem:[#allocation2] sm:$0xff]
  %v491 = vld [vmem:[%s2] sm:$0xff]
  %v492 = vld [vmem:[%s2 + $0x8] sm:$0xff]
  %v493 = vld [vmem:[%s2 + $0x10] sm:$0xff]
  %v494 = vld [vmem:[%s2 + $0x18] sm:$0xff]
  %v495 = vld [vmem:[%s2 + $0x20] sm:$0xff]
  %v496 = vld [vmem:[%s2 + $0x28] sm:$0xff]
  %v497 = vld [vmem:[%s2 + $0x30] sm:$0xff]
  %v498 = vld [vmem:[%s2 + $0x38] sm:$0xff]
  %v499 = vld [vmem:[%s2 + $0x40] sm:$0xff]
  %v500 = vld [vmem:[%s2 + $0x48] sm:$0xff]
  %v501 = vld [vmem:[%s2 + $0x50] sm:$0xff]
  %v502 = vld [vmem:[%s2 + $0x58] sm:$0xff]
  %v503 = vld [vmem:[%s2 + $0x60] sm:$0xff]
  %v504 = vld [vmem:[%s2 + $0x68] sm:$0xff]
  %v505 = vld [vmem:[%s2 + $0x70] sm:$0xff]
  %v506 = vld [vmem:[%s2 + $0x78] sm:$0xff]
  %507 = vmatprep.subr.mxu0 0.0
  %508 = vmatpush1.msra.mxu0 %v491
  %509 = vmatprep.subr.mxu0 0.0
  %510 = vmatpush1.msra.mxu0 %v492
  %511 = vmatprep.subr.mxu0 0.0
  %512 = vmatpush1.msra.mxu0 %v493
  %513 = vmatprep.subr.mxu0 0.0
  %514 = vmatpush1.msra.mxu0 %v494
  %515 = vmatprep.subr.mxu0 0.0
  %516 = vmatpush1.msra.mxu0 %v495
  %517 = vmatprep.subr.mxu0 0.0
  %518 = vmatpush1.msra.mxu0 %v496
  %519 = vmatprep.subr.mxu0 0.0
  %520 = vmatpush1.msra.mxu0 %v497
  %521 = vmatprep.subr.mxu0 0.0
  %522 = vmatpush1.msra.mxu0 %v498
  %523 = vmatprep.subr.mxu0 0.0
  %524 = vmatpush1.msra.mxu0 %v499
  %525 = vmatprep.subr.mxu0 0.0
  %526 = vmatpush1.msra.mxu0 %v500
  %527 = vmatprep.subr.mxu0 0.0
  %528 = vmatpush1.msra.mxu0 %v501
  %529 = vmatprep.subr.mxu0 0.0
  %530 = vmatpush1.msra.mxu0 %v502
  %531 = vmatprep.subr.mxu0 0.0
  %532 = vmatpush1.msra.mxu0 %v503
  %533 = vmatprep.subr.mxu0 0.0
  %534 = vmatpush1.msra.mxu0 %v504
  %535 = vmatprep.subr.mxu0 0.0
  %536 = vmatpush1.msra.mxu0 %v505
  %537 = vmatprep.subr.mxu0 0.0
  %538 = vmatpush1.msra.mxu0 %v506
  %539 = vmatprep.subr.mxu0 0.0
  %540 = vmatpush1.msra.mxu0 0.0
  %541 = vmatprep.subr.mxu0 0.0
  %542 = vmatpush1.msra.mxu0 0.0
  %543 = vmatprep.subr.mxu0 0.0
  %544 = vmatpush1.msra.mxu0 0.0
  %545 = vmatprep.subr.mxu0 0.0
  %546 = vmatpush1.msra.mxu0 0.0
  %547 = vmatprep.subr.mxu0 0.0
  %548 = vmatpush1.msra.mxu0 0.0
  %549 = vmatprep.subr.mxu0 0.0
  %550 = vmatpush1.msra.mxu0 0.0
  %551 = vmatprep.subr.mxu0 0.0
  %552 = vmatpush1.msra.mxu0 0.0
  %553 = vmatprep.subr.mxu0 0.0
  %554 = vmatpush1.msra.mxu0 0.0
  %555 = vmatprep.subr.mxu0 0.0
  %556 = vmatpush1.msra.mxu0 0.0
  %557 = vmatprep.subr.mxu0 0.0
  %558 = vmatpush1.msra.mxu0 0.0
  %559 = vmatprep.subr.mxu0 0.0
  %560 = vmatpush1.msra.mxu0 0.0
  %561 = vmatprep.subr.mxu0 0.0
  %562 = vmatpush1.msra.mxu0 0.0
  %563 = vmatprep.subr.mxu0 0.0
  %564 = vmatpush1.msra.mxu0 0.0
  %565 = vmatprep.subr.mxu0 0.0
  %566 = vmatpush1.msra.mxu0 0.0
  %567 = vmatprep.subr.mxu0 0.0
  %568 = vmatpush1.msra.mxu0 0.0
  %569 = vmatprep.subr.mxu0 0.0
  %570 = vmatpush1.msra.mxu0 0.0
  %571 = vmatprep.mubr.f32.mxu0 0.0
  %572 = vmatmul.mubr.f32.gmra.mrb[0].mxu0 %v490
  %v573 = vpop.f32.mrb[0].mxu0
  %v574 = vadd.f32 0.0, %v573
  %v575 = vpop.f32.mrb[0].mxu0
  %576 = vdwg.mxu0
  %v577 = vadd.f32 %v489, %v574
  %v578 = vtanh.pop %v577
  %579 = vst [vmem:[#allocation2] sm:$0xff] %v578
  %s580 = scalar_lea.vmem %s3, 40
  %581 = vst [vmem:[%s580] sm:$0xff] %v578
  %s582 = scalar_lea.vmem %s0, 48
  %v583 = vld [vmem:[%s582] sm:$0xff]
  %v584 = vld [vmem:[#allocation2] sm:$0xff]
  %v585 = vld [vmem:[%s2] sm:$0xff]
  %v586 = vld [vmem:[%s2 + $0x8] sm:$0xff]
  %v587 = vld [vmem:[%s2 + $0x10] sm:$0xff]
  %v588 = vld [vmem:[%s2 + $0x18] sm:$0xff]
  %v589 = vld [vmem:[%s2 + $0x20] sm:$0xff]
  %v590 = vld [vmem:[%s2 + $0x28] sm:$0xff]
  %v591 = vld [vmem:[%s2 + $0x30] sm:$0xff]
  %v592 = vld [vmem:[%s2 + $0x38] sm:$0xff]
  %v593 = vld [vmem:[%s2 + $0x40] sm:$0xff]
  %v594 = vld [vmem:[%s2 + $0x48] sm:$0xff]
  %v595 = vld [vmem:[%s2 + $0x50] sm:$0xff]
  %v596 = vld [vmem:[%s2 + $0x58] sm:$0xff]
  %v597 = vld [vmem:[%s2 + $0x60] sm:$0xff]
  %v598 = vld [vmem:[%s2 + $0x68] sm:$0xff]
  %v599 = vld [vmem:[%s2 + $0x70] sm:$0xff]
  %v600 = vld [vmem:[%s2 + $0x78] sm:$0xff]
  %601 = vmatprep.subr.mxu0 0.0
  %602 = vmatpush1.msra.mxu0 %v585
  %603 = vmatprep.subr.mxu0 0.0
  %604 = vmatpush1.msra.mxu0 %v586
  %605 = vmatprep.subr.mxu0 0.0
  %606 = vmatpush1.msra.mxu0 %v587
  %607 = vmatprep.subr.mxu0 0.0
  %608 = vmatpush1.msra.mxu0 %v588
  %609 = vmatprep.subr.mxu0 0.0
  %610 = vmatpush1.msra.mxu0 %v589
  %611 = vmatprep.subr.mxu0 0.0
  %612 = vmatpush1.msra.mxu0 %v590
  %613 = vmatprep.subr.mxu0 0.0
  %614 = vmatpush1.msra.mxu0 %v591
  %615 = vmatprep.subr.mxu0 0.0
  %616 = vmatpush1.msra.mxu0 %v592
  %617 = vmatprep.subr.mxu0 0.0
  %618 = vmatpush1.msra.mxu0 %v593
  %619 = vmatprep.subr.mxu0 0.0
  %620 = vmatpush1.msra.mxu0 %v594
  %621 = vmatprep.subr.mxu0 0.0
  %622 = vmatpush1.msra.mxu0 %v595
  %623 = vmatprep.subr.mxu0 0.0
  %624 = vmatpush1.msra.mxu0 %v596
  %625 = vmatprep.subr.mxu0 0.0
  %626 = vmatpush1.msra.mxu0 %v597
  %627 = vmatprep.subr.mxu0 0.0
  %628 = vmatpush1.msra.mxu0 %v598
  %629 = vmatprep.subr.mxu0 0.0
  %630 = vmatpush1.msra.mxu0 %v599
  %631 = vmatprep.subr.mxu0 0.0
  %632 = vmatpush1.msra.mxu0 %v600
  %633 = vmatprep.subr.mxu0 0.0
  %634 = vmatpush1.msra.mxu0 0.0
  %635 = vmatprep.subr.mxu0 0.0
  %636 = vmatpush1.msra.mxu0 0.0
  %637 = vmatprep.subr.mxu0 0.0
  %638 = vmatpush1.msra.mxu0 0.0
  %639 = vmatprep.subr.mxu0 0.0
  %640 = vmatpush1.msra.mxu0 0.0
  %641 = vmatprep.subr.mxu0 0.0
  %642 = vmatpush1.msra.mxu0 0.0
  %643 = vmatprep.subr.mxu0 0.0
  %644 = vmatpush1.msra.mxu0 0.0
  %645 = vmatprep.subr.mxu0 0.0
  %646 = vmatpush1.msra.mxu0 0.0
  %647 = vmatprep.subr.mxu0 0.0
  %648 = vmatpush1.msra.mxu0 0.0
  %649 = vmatprep.subr.mxu0 0.0
  %650 = vmatpush1.msra.mxu0 0.0
  %651 = vmatprep.subr.mxu0 0.0
  %652 = vmatpush1.msra.mxu0 0.0
  %653 = vmatprep.subr.mxu0 0.0
  %654 = vmatpush1.msra.mxu0 0.0
  %655 = vmatprep.subr.mxu0 0.0
  %656 = vmatpush1.msra.mxu0 0.0
  %657 = vmatprep.subr.mxu0 0.0
  %658 = vmatpush1.msra.mxu0 0.0
  %659 = vmatprep.subr.mxu0 0.0
  %660 = vmatpush1.msra.mxu0 0.0
  %661 = vmatprep.subr.mxu0 0.0
  %662 = vmatpush1.msra.mxu0 0.0
  %663 = vmatprep.subr.mxu0 0.0
  %664 = vmatpush1.msra.mxu0 0.0
  %665 = vmatprep.mubr.f32.mxu0 0.0
  %666 = vmatmul.mubr.f32.gmra.mrb[0].mxu0 %v584
  %v667 = vpop.f32.mrb[0].mxu0
  %v668 = vadd.f32 0.0, %v667
  %v669 = vpop.f32.mrb[0].mxu0
  %670 = vdwg.mxu0
  %v671 = vadd.f32 %v583, %v668
  %v672 = vtanh.pop %v671
  %673 = vst [vmem:[#allocation2] sm:$0xff] %v672
  %s674 = scalar_lea.vmem %s3, 48
  %675 = vst [vmem:[%s674] sm:$0xff] %v672
  %s676 = scalar_lea.vmem %s0, 56
  %v677 = vld [vmem:[%s676] sm:$0xff]
  %v678 = vld [vmem:[#allocation2] sm:$0xff]
  %v679 = vld [vmem:[%s2] sm:$0xff]
  %v680 = vld [vmem:[%s2 + $0x8] sm:$0xff]
  %v681 = vld [vmem:[%s2 + $0x10] sm:$0xff]
  %v682 = vld [vmem:[%s2 + $0x18] sm:$0xff]
  %v683 = vld [vmem:[%s2 + $0x20] sm:$0xff]
  %v684 = vld [vmem:[%s2 + $0x28] sm:$0xff]
  %v685 = vld [vmem:[%s2 + $0x30] sm:$0xff]
  %v686 = vld [vmem:[%s2 + $0x38] sm:$0xff]
  %v687 = vld [vmem:[%s2 + $0x40] sm:$0xff]
  %v688 = vld [vmem:[%s2 + $0x48] sm:$0xff]
  %v689 = vld [vmem:[%s2 + $0x50] sm:$0xff]
  %v690 = vld [vmem:[%s2 + $0x58] sm:$0xff]
  %v691 = vld [vmem:[%s2 + $0x60] sm:$0xff]
  %v692 = vld [vmem:[%s2 + $0x68] sm:$0xff]
  %v693 = vld [vmem:[%s2 + $0x70] sm:$0xff]
  %v694 = vld [vmem:[%s2 + $0x78] sm:$0xff]
  %695 = vmatprep.subr.mxu0 0.0
  %696 = vmatpush1.msra.mxu0 %v679
  %697 = vmatprep.subr.mxu0 0.0
  %698 = vmatpush1.msra.mxu0 %v680
  %699 = vmatprep.subr.mxu0 0.0
  %700 = vmatpush1.msra.mxu0 %v681
  %701 = vmatprep.subr.mxu0 0.0
  %702 = vmatpush1.msra.mxu0 %v682
  %703 = vmatprep.subr.mxu0 0.0
  %704 = vmatpush1.msra.mxu0 %v683
  %705 = vmatprep.subr.mxu0 0.0
  %706 = vmatpush1.msra.mxu0 %v684
  %707 = vmatprep.subr.mxu0 0.0
  %708 = vmatpush1.msra.mxu0 %v685
  %709 = vmatprep.subr.mxu0 0.0
  %710 = vmatpush1.msra.mxu0 %v686
  %711 = vmatprep.subr.mxu0 0.0
  %712 = vmatpush1.msra.mxu0 %v687
  %713 = vmatprep.subr.mxu0 0.0
  %714 = vmatpush1.msra.mxu0 %v688
  %715 = vmatprep.subr.mxu0 0.0
  %716 = vmatpush1.msra.mxu0 %v689
  %717 = vmatprep.subr.mxu0 0.0
  %718 = vmatpush1.msra.mxu0 %v690
  %719 = vmatprep.subr.mxu0 0.0
  %720 = vmatpush1.msra.mxu0 %v691
  %721 = vmatprep.subr.mxu0 0.0
  %722 = vmatpush1.msra.mxu0 %v692
  %723 = vmatprep.subr.mxu0 0.0
  %724 = vmatpush1.msra.mxu0 %v693
  %725 = vmatprep.subr.mxu0 0.0
  %726 = vmatpush1.msra.mxu0 %v694
  %727 = vmatprep.subr.mxu0 0.0
  %728 = vmatpush1.msra.mxu0 0.0
  %729 = vmatprep.subr.mxu0 0.0
  %730 = vmatpush1.msra.mxu0 0.0
  %731 = vmatprep.subr.mxu0 0.0
  %732 = vmatpush1.msra.mxu0 0.0
  %733 = vmatprep.subr.mxu0 0.0
  %734 = vmatpush1.msra.mxu0 0.0
  %735 = vmatprep.subr.mxu0 0.0
  %736 = vmatpush1.msra.mxu0 0.0
  %737 = vmatprep.subr.mxu0 0.0
  %738 = vmatpush1.msra.mxu0 0.0
  %739 = vmatprep.subr.mxu0 0.0
  %740 = vmatpush1.msra.mxu0 0.0
  %741 = vmatprep.subr.mxu0 0.0
  %742 = vmatpush1.msra.mxu0 0.0
  %743 = vmatprep.subr.mxu0 0.0
  %744 = vmatpush1.msra.mxu0 0.0
  %745 = vmatprep.subr.mxu0 0.0
  %746 = vmatpush1.msra.mxu0 0.0
  %747 = vmatprep.subr.mxu0 0.0
  %748 = vmatpush1.msra.mxu0 0.0
  %749 = vmatprep.subr.mxu0 0.0
  %750 = vmatpush1.msra.mxu0 0.0
  %751 = vmatprep.subr.mxu0 0.0
  %752 = vmatpush1.msra.mxu0 0.0
  %753 = vmatprep.subr.mxu0 0.0
  %754 = vmatpush1.msra.mxu0 0.0
  %755 = vmatprep.subr.mxu0 0.0
  %756 = vmatpush1.msra.mxu0 0.0
  %757 = vmatprep.subr.mxu0 0.0
  %758 = vmatpush1.msra.mxu0 0.0
  %759 = vmatprep.mubr.f32.mxu0 0.0
  %760 = vmatmul.mubr.f32.gmra.mrb[0].mxu0 %v678
  %v761 = vpop.f32.mrb[0].mxu0
  %v762 = vadd.f32 0.0, %v761
  %v763 = vpop.f32.mrb[0].mxu0
  %764 = vdwg.mxu0
  %v765 = vadd.f32 %v677, %v762
  %v766 = vtanh.pop %v765
  %767 = vst [vmem:[#allocation2] sm:$0xff] %v766
  %s768 = scalar_lea.vmem %s3, 56
  %769 = vst [vmem:[%s768] sm:$0xff] %v766
  %s770 = scalar_lea.vmem %s0, 64
  %v771 = vld [vmem:[%s770] sm:$0xff]
  %v772 = vld [vmem:[#allocation2] sm:$0xff]
  %v773 = vld [vmem:[%s2] sm:$0xff]
  %v774 = vld [vmem:[%s2 + $0x8] sm:$0xff]
  %v775 = vld [vmem:[%s2 + $0x10] sm:$0xff]
  %v776 = vld [vmem:[%s2 + $0x18] sm:$0xff]
  %v777 = vld [vmem:[%s2 + $0x20] sm:$0xff]
  %v778 = vld [vmem:[%s2 + $0x28] sm:$0xff]
  %v779 = vld [vmem:[%s2 + $0x30] sm:$0xff]
  %v780 = vld [vmem:[%s2 + $0x38] sm:$0xff]
  %v781 = vld [vmem:[%s2 + $0x40] sm:$0xff]
  %v782 = vld [vmem:[%s2 + $0x48] sm:$0xff]
  %v783 = vld [vmem:[%s2 + $0x50] sm:$0xff]
  %v784 = vld [vmem:[%s2 + $0x58] sm:$0xff]
  %v785 = vld [vmem:[%s2 + $0x60] sm:$0xff]
  %v786 = vld [vmem:[%s2 + $0x68] sm:$0xff]
  %v787 = vld [vmem:[%s2 + $0x70] sm:$0xff]
  %v788 = vld [vmem:[%s2 + $0x78] sm:$0xff]
  %789 = vmatprep.subr.mxu0 0.0
  %790 = vmatpush1.msra.mxu0 %v773
  %791 = vmatprep.subr.mxu0 0.0
  %792 = vmatpush1.msra.mxu0 %v774
  %793 = vmatprep.subr.mxu0 0.0
  %794 = vmatpush1.msra.mxu0 %v775
  %795 = vmatprep.subr.mxu0 0.0
  %796 = vmatpush1.msra.mxu0 %v776
  %797 = vmatprep.subr.mxu0 0.0
  %798 = vmatpush1.msra.mxu0 %v777
  %799 = vmatprep.subr.mxu0 0.0
  %800 = vmatpush1.msra.mxu0 %v778
  %801 = vmatprep.subr.mxu0 0.0
  %802 = vmatpush1.msra.mxu0 %v779
  %803 = vmatprep.subr.mxu0 0.0
  %804 = vmatpush1.msra.mxu0 %v780
  %805 = vmatprep.subr.mxu0 0.0
  %806 = vmatpush1.msra.mxu0 %v781
  %807 = vmatprep.subr.mxu0 0.0
  %808 = vmatpush1.msra.mxu0 %v782
  %809 = vmatprep.subr.mxu0 0.0
  %810 = vmatpush1.msra.mxu0 %v783
  %811 = vmatprep.subr.mxu0 0.0
  %812 = vmatpush1.msra.mxu0 %v784
  %813 = vmatprep.subr.mxu0 0.0
  %814 = vmatpush1.msra.mxu0 %v785
  %815 = vmatprep.subr.mxu0 0.0
  %816 = vmatpush1.msra.mxu0 %v786
  %817 = vmatprep.subr.mxu0 0.0
  %818 = vmatpush1.msra.mxu0 %v787
  %819 = vmatprep.subr.mxu0 0.0
  %820 = vmatpush1.msra.mxu0 %v788
  %821 = vmatprep.subr.mxu0 0.0
  %822 = vmatpush1.msra.mxu0 0.0
  %823 = vmatprep.subr.mxu0 0.0
  %824 = vmatpush1.msra.mxu0 0.0
  %825 = vmatprep.subr.mxu0 0.0
  %826 = vmatpush1.msra.mxu0 0.0
  %827 = vmatprep.subr.mxu0 0.0
  %828 = vmatpush1.msra.mxu0 0.0
  %829 = vmatprep.subr.mxu0 0.0
  %830 = vmatpush1.msra.mxu0 0.0
  %831 = vmatprep.subr.mxu0 0.0
  %832 = vmatpush1.msra.mxu0 0.0
  %833 = vmatprep.subr.mxu0 0.0
  %834 = vmatpush1.msra.mxu0 0.0
  %835 = vmatprep.subr.mxu0 0.0
  %836 = vmatpush1.msra.mxu0 0.0
  %837 = vmatprep.subr.mxu0 0.0
  %838 = vmatpush1.msra.mxu0 0.0
  %839 = vmatprep.subr.mxu0 0.0
  %840 = vmatpush1.msra.mxu0 0.0
  %841 = vmatprep.subr.mxu0 0.0
  %842 = vmatpush1.msra.mxu0 0.0
  %843 = vmatprep.subr.mxu0 0.0
  %844 = vmatpush1.msra.mxu0 0.0
  %845 = vmatprep.subr.mxu0 0.0
  %846 = vmatpush1.msra.mxu0 0.0
  %847 = vmatprep.subr.mxu0 0.0
  %848 = vmatpush1.msra.mxu0 0.0
  %849 = vmatprep.subr.mxu0 0.0
  %850 = vmatpush1.msra.mxu0 0.0
  %851 = vmatprep.subr.mxu0 0.0
  %852 = vmatpush1.msra.mxu0 0.0
  %853 = vmatprep.mubr.f32.mxu0 0.0
  %854 = vmatmul.mubr.f32.gmra.mrb[0].mxu0 %v772
  %v855 = vpop.f32.mrb[0].mxu0
  %v856 = vadd.f32 0.0, %v855
  %v857 = vpop.f32.mrb[0].mxu0
  %858 = vdwg.mxu0
  %v859 = vadd.f32 %v771, %v856
  %v860 = vtanh.pop %v859
  %861 = vst [vmem:[#allocation2] sm:$0xff] %v860
  %s862 = scalar_lea.vmem %s3, 64
  %863 = vst [vmem:[%s862] sm:$0xff] %v860
  %s864 = scalar_lea.vmem %s0, 72
  %v865 = vld [vmem:[%s864] sm:$0xff]
  %v866 = vld [vmem:[#allocation2] sm:$0xff]
  %v867 = vld [vmem:[%s2] sm:$0xff]
  %v868 = vld [vmem:[%s2 + $0x8] sm:$0xff]
  %v869 = vld [vmem:[%s2 + $0x10] sm:$0xff]
  %v870 = vld [vmem:[%s2 + $0x18] sm:$0xff]
  %v871 = vld [vmem:[%s2 + $0x20] sm:$0xff]
  %v872 = vld [vmem:[%s2 + $0x28] sm:$0xff]
  %v873 = vld [vmem:[%s2 + $0x30] sm:$0xff]
  %v874 = vld [vmem:[%s2 + $0x38] sm:$0xff]
  %v875 = vld [vmem:[%s2 + $0x40] sm:$0xff]
  %v876 = vld [vmem:[%s2 + $0x48] sm:$0xff]
  %v877 = vld [vmem:[%s2 + $0x50] sm:$0xff]
  %v878 = vld [vmem:[%s2 + $0x58] sm:$0xff]
  %v879 = vld [vmem:[%s2 + $0x60] sm:$0xff]
  %v880 = vld [vmem:[%s2 + $0x68] sm:$0xff]
  %v881 = vld [vmem:[%s2 + $0x70] sm:$0xff]
  %v882 = vld [vmem:[%s2 + $0x78] sm:$0xff]
  %883 = vmatprep.subr.mxu0 0.0
  %884 = vmatpush1.msra.mxu0 %v867
  %885 = vmatprep.subr.mxu0 0.0
  %886 = vmatpush1.msra.mxu0 %v868
  %887 = vmatprep.subr.mxu0 0.0
  %888 = vmatpush1.msra.mxu0 %v869
  %889 = vmatprep.subr.mxu0 0.0
  %890 = vmatpush1.msra.mxu0 %v870
  %891 = vmatprep.subr.mxu0 0.0
  %892 = vmatpush1.msra.mxu0 %v871
  %893 = vmatprep.subr.mxu0 0.0
  %894 = vmatpush1.msra.mxu0 %v872
  %895 = vmatprep.subr.mxu0 0.0
  %896 = vmatpush1.msra.mxu0 %v873
  %897 = vmatprep.subr.mxu0 0.0
  %898 = vmatpush1.msra.mxu0 %v874
  %899 = vmatprep.subr.mxu0 0.0
  %900 = vmatpush1.msra.mxu0 %v875
  %901 = vmatprep.subr.mxu0 0.0
  %902 = vmatpush1.msra.mxu0 %v876
  %903 = vmatprep.subr.mxu0 0.0
  %904 = vmatpush1.msra.mxu0 %v877
  %905 = vmatprep.subr.mxu0 0.0
  %906 = vmatpush1.msra.mxu0 %v878
  %907 = vmatprep.subr.mxu0 0.0
  %908 = vmatpush1.msra.mxu0 %v879
  %909 = vmatprep.subr.mxu0 0.0
  %910 = vmatpush1.msra.mxu0 %v880
  %911 = vmatprep.subr.mxu0 0.0
  %912 = vmatpush1.msra.mxu0 %v881
  %913 = vmatprep.subr.mxu0 0.0
  %914 = vmatpush1.msra.mxu0 %v882
  %915 = vmatprep.subr.mxu0 0.0
  %916 = vmatpush1.msra.mxu0 0.0
  %917 = vmatprep.subr.mxu0 0.0
  %918 = vmatpush1.msra.mxu0 0.0
  %919 = vmatprep.subr.mxu0 0.0
  %920 = vmatpush1.msra.mxu0 0.0
  %921 = vmatprep.subr.mxu0 0.0
  %922 = vmatpush1.msra.mxu0 0.0
  %923 = vmatprep.subr.mxu0 0.0
  %924 = vmatpush1.msra.mxu0 0.0
  %925 = vmatprep.subr.mxu0 0.0
  %926 = vmatpush1.msra.mxu0 0.0
  %927 = vmatprep.subr.mxu0 0.0
  %928 = vmatpush1.msra.mxu0 0.0
  %929 = vmatprep.subr.mxu0 0.0
  %930 = vmatpush1.msra.mxu0 0.0
  %931 = vmatprep.subr.mxu0 0.0
  %932 = vmatpush1.msra.mxu0 0.0
  %933 = vmatprep.subr.mxu0 0.0
  %934 = vmatpush1.msra.mxu0 0.0
  %935 = vmatprep.subr.mxu0 0.0
  %936 = vmatpush1.msra.mxu0 0.0
  %937 = vmatprep.subr.mxu0 0.0
  %938 = vmatpush1.msra.mxu0 0.0
  %939 = vmatprep.subr.mxu0 0.0
  %940 = vmatpush1.msra.mxu0 0.0
  %941 = vmatprep.subr.mxu0 0.0
  %942 = vmatpush1.msra.mxu0 0.0
  %943 = vmatprep.subr.mxu0 0.0
  %944 = vmatpush1.msra.mxu0 0.0
  %945 = vmatprep.subr.mxu0 0.0
  %946 = vmatpush1.msra.mxu0 0.0
  %947 = vmatprep.mubr.f32.mxu0 0.0
  %948 = vmatmul.mubr.f32.gmra.mrb[0].mxu0 %v866
  %v949 = vpop.f32.mrb[0].mxu0
  %v950 = vadd.f32 0.0, %v949
  %v951 = vpop.f32.mrb[0].mxu0
  %952 = vdwg.mxu0
  %v953 = vadd.f32 %v865, %v950
  %v954 = vtanh.pop %v953
  %955 = vst [vmem:[#allocation2] sm:$0xff] %v954
  %s956 = scalar_lea.vmem %s3, 72
  %957 = vst [vmem:[%s956] sm:$0xff] %v954
  %s958 = scalar_lea.vmem %s0, 80
  %v959 = vld [vmem:[%s958] sm:$0xff]
  %v960 = vld [vmem:[#allocation2] sm:$0xff]
  %v961 = vld [vmem:[%s2] sm:$0xff]
  %v962 = vld [vmem:[%s2 + $0x8] sm:$0xff]
  %v963 = vld [vmem:[%s2 + $0x10] sm:$0xff]
  %v964 = vld [vmem:[%s2 + $0x18] sm:$0xff]
  %v965 = vld [vmem:[%s2 + $0x20] sm:$0xff]
  %v966 = vld [vmem:[%s2 + $0x28] sm:$0xff]
  %v967 = vld [vmem:[%s2 + $0x30] sm:$0xff]
  %v968 = vld [vmem:[%s2 + $0x38] sm:$0xff]
  %v969 = vld [vmem:[%s2 + $0x40] sm:$0xff]
  %v970 = vld [vmem:[%s2 + $0x48] sm:$0xff]
  %v971 = vld [vmem:[%s2 + $0x50] sm:$0xff]
  %v972 = vld [vmem:[%s2 + $0x58] sm:$0xff]
  %v973 = vld [vmem:[%s2 + $0x60] sm:$0xff]
  %v974 = vld [vmem:[%s2 + $0x68] sm:$0xff]
  %v975 = vld [vmem:[%s2 + $0x70] sm:$0xff]
  %v976 = vld [vmem:[%s2 + $0x78] sm:$0xff]
  %977 = vmatprep.subr.mxu0 0.0
  %978 = vmatpush1.msra.mxu0 %v961
  %979 = vmatprep.subr.mxu0 0.0
  %980 = vmatpush1.msra.mxu0 %v962
  %981 = vmatprep.subr.mxu0 0.0
  %982 = vmatpush1.msra.mxu0 %v963
  %983 = vmatprep.subr.mxu0 0.0
  %984 = vmatpush1.msra.mxu0 %v964
  %985 = vmatprep.subr.mxu0 0.0
  %986 = vmatpush1.msra.mxu0 %v965
  %987 = vmatprep.subr.mxu0 0.0
  %988 = vmatpush1.msra.mxu0 %v966
  %989 = vmatprep.subr.mxu0 0.0
  %990 = vmatpush1.msra.mxu0 %v967
  %991 = vmatprep.subr.mxu0 0.0
  %992 = vmatpush1.msra.mxu0 %v968
  %993 = vmatprep.subr.mxu0 0.0
  %994 = vmatpush1.msra.mxu0 %v969
  %995 = vmatprep.subr.mxu0 0.0
  %996 = vmatpush1.msra.mxu0 %v970
  %997 = vmatprep.subr.mxu0 0.0
  %998 = vmatpush1.msra.mxu0 %v971
  %999 = vmatprep.subr.mxu0 0.0
  %1000 = vmatpush1.msra.mxu0 %v972
  %1001 = vmatprep.subr.mxu0 0.0
  %1002 = vmatpush1.msra.mxu0 %v973
  %1003 = vmatprep.subr.mxu0 0.0
  %1004 = vmatpush1.msra.mxu0 %v974
  %1005 = vmatprep.subr.mxu0 0.0
  %1006 = vmatpush1.msra.mxu0 %v975
  %1007 = vmatprep.subr.mxu0 0.0
  %1008 = vmatpush1.msra.mxu0 %v976
  %1009 = vmatprep.subr.mxu0 0.0
  %1010 = vmatpush1.msra.mxu0 0.0
  %1011 = vmatprep.subr.mxu0 0.0
  %1012 = vmatpush1.msra.mxu0 0.0
  %1013 = vmatprep.subr.mxu0 0.0
  %1014 = vmatpush1.msra.mxu0 0.0
  %1015 = vmatprep.subr.mxu0 0.0
  %1016 = vmatpush1.msra.mxu0 0.0
  %1017 = vmatprep.subr.mxu0 0.0
  %1018 = vmatpush1.msra.mxu0 0.0
  %1019 = vmatprep.subr.mxu0 0.0
  %1020 = vmatpush1.msra.mxu0 0.0
  %1021 = vmatprep.subr.mxu0 0.0
  %1022 = vmatpush1.msra.mxu0 0.0
  %1023 = vmatprep.subr.mxu0 0.0
  %1024 = vmatpush1.msra.mxu0 0.0
  %1025 = vmatprep.subr.mxu0 0.0
  %1026 = vmatpush1.msra.mxu0 0.0
  %1027 = vmatprep.subr.mxu0 0.0
  %1028 = vmatpush1.msra.mxu0 0.0
  %1029 = vmatprep.subr.mxu0 0.0
  %1030 = vmatpush1.msra.mxu0 0.0
  %1031 = vmatprep.subr.mxu0 0.0
  %1032 = vmatpush1.msra.mxu0 0.0
  %1033 = vmatprep.subr.mxu0 0.0
  %1034 = vmatpush1.msra.mxu0 0.0
  %1035 = vmatprep.subr.mxu0 0.0
  %1036 = vmatpush1.msra.mxu0 0.0
  %1037 = vmatprep.subr.mxu0 0.0
  %1038 = vmatpush1.msra.mxu0 0.0
  %1039 = vmatprep.subr.mxu0 0.0
  %1040 = vmatpush1.msra.mxu0 0.0
  %1041 = vmatprep.mubr.f32.mxu0 0.0
  %1042 = vmatmul.mubr.f32.gmra.mrb[0].mxu0 %v960
  %v1043 = vpop.f32.mrb[0].mxu0
  %v1044 = vadd.f32 0.0, %v1043
  %v1045 = vpop.f32.mrb[0].mxu0
  %1046 = vdwg.mxu0
  %v1047 = vadd.f32 %v959, %v1044
  %v1048 = vtanh.pop %v1047
  %1049 = vst [vmem:[#allocation2] sm:$0xff] %v1048
  %s1050 = scalar_lea.vmem %s3, 80
  %1051 = vst [vmem:[%s1050] sm:$0xff] %v1048
  %s1052 = scalar_lea.vmem %s0, 88
  %v1053 = vld [vmem:[%s1052] sm:$0xff]
  %v1054 = vld [vmem:[#allocation2] sm:$0xff]
  %v1055 = vld [vmem:[%s2] sm:$0xff]
  %v1056 = vld [vmem:[%s2 + $0x8] sm:$0xff]
  %v1057 = vld [vmem:[%s2 + $0x10] sm:$0xff]
  %v1058 = vld [vmem:[%s2 + $0x18] sm:$0xff]
  %v1059 = vld [vmem:[%s2 + $0x20] sm:$0xff]
  %v1060 = vld [vmem:[%s2 + $0x28] sm:$0xff]
  %v1061 = vld [vmem:[%s2 + $0x30] sm:$0xff]
  %v1062 = vld [vmem:[%s2 + $0x38] sm:$0xff]
  %v1063 = vld [vmem:[%s2 + $0x40] sm:$0xff]
  %v1064 = vld [vmem:[%s2 + $0x48] sm:$0xff]
  %v1065 = vld [vmem:[%s2 + $0x50] sm:$0xff]
  %v1066 = vld [vmem:[%s2 + $0x58] sm:$0xff]
  %v1067 = vld [vmem:[%s2 + $0x60] sm:$0xff]
  %v1068 = vld [vmem:[%s2 + $0x68] sm:$0xff]
  %v1069 = vld [vmem:[%s2 + $0x70] sm:$0xff]
  %v1070 = vld [vmem:[%s2 + $0x78] sm:$0xff]
  %1071 = vmatprep.subr.mxu0 0.0
  %1072 = vmatpush1.msra.mxu0 %v1055
  %1073 = vmatprep.subr.mxu0 0.0
  %1074 = vmatpush1.msra.mxu0 %v1056
  %1075 = vmatprep.subr.mxu0 0.0
  %1076 = vmatpush1.msra.mxu0 %v1057
  %1077 = vmatprep.subr.mxu0 0.0
  %1078 = vmatpush1.msra.mxu0 %v1058
  %1079 = vmatprep.subr.mxu0 0.0
  %1080 = vmatpush1.msra.mxu0 %v1059
  %1081 = vmatprep.subr.mxu0 0.0
  %1082 = vmatpush1.msra.mxu0 %v1060
  %1083 = vmatprep.subr.mxu0 0.0
  %1084 = vmatpush1.msra.mxu0 %v1061
  %1085 = vmatprep.subr.mxu0 0.0
  %1086 = vmatpush1.msra.mxu0 %v1062
  %1087 = vmatprep.subr.mxu0 0.0
  %1088 = vmatpush1.msra.mxu0 %v1063
  %1089 = vmatprep.subr.mxu0 0.0
  %1090 = vmatpush1.msra.mxu0 %v1064
  %1091 = vmatprep.subr.mxu0 0.0
  %1092 = vmatpush1.msra.mxu0 %v1065
  %1093 = vmatprep.subr.mxu0 0.0
  %1094 = vmatpush1.msra.mxu0 %v1066
  %1095 = vmatprep.subr.mxu0 0.0
  %1096 = vmatpush1.msra.mxu0 %v1067
  %1097 = vmatprep.subr.mxu0 0.0
  %1098 = vmatpush1.msra.mxu0 %v1068
  %1099 = vmatprep.subr.mxu0 0.0
  %1100 = vmatpush1.msra.mxu0 %v1069
  %1101 = vmatprep.subr.mxu0 0.0
  %1102 = vmatpush1.msra.mxu0 %v1070
  %1103 = vmatprep.subr.mxu0 0.0
  %1104 = vmatpush1.msra.mxu0 0.0
  %1105 = vmatprep.subr.mxu0 0.0
  %1106 = vmatpush1.msra.mxu0 0.0
  %1107 = vmatprep.subr.mxu0 0.0
  %1108 = vmatpush1.msra.mxu0 0.0
  %1109 = vmatprep.subr.mxu0 0.0
  %1110 = vmatpush1.msra.mxu0 0.0
  %1111 = vmatprep.subr.mxu0 0.0
  %1112 = vmatpush1.msra.mxu0 0.0
  %1113 = vmatprep.subr.mxu0 0.0
  %1114 = vmatpush1.msra.mxu0 0.0
  %1115 = vmatprep.subr.mxu0 0.0
  %1116 = vmatpush1.msra.mxu0 0.0
  %1117 = vmatprep.subr.mxu0 0.0
  %1118 = vmatpush1.msra.mxu0 0.0
  %1119 = vmatprep.subr.mxu0 0.0
  %1120 = vmatpush1.msra.mxu0 0.0
  %1121 = vmatprep.subr.mxu0 0.0
  %1122 = vmatpush1.msra.mxu0 0.0
  %1123 = vmatprep.subr.mxu0 0.0
  %1124 = vmatpush1.msra.mxu0 0.0
  %1125 = vmatprep.subr.mxu0 0.0
  %1126 = vmatpush1.msra.mxu0 0.0
  %1127 = vmatprep.subr.mxu0 0.0
  %1128 = vmatpush1.msra.mxu0 0.0
  %1129 = vmatprep.subr.mxu0 0.0
  %1130 = vmatpush1.msra.mxu0 0.0
  %1131 = vmatprep.subr.mxu0 0.0
  %1132 = vmatpush1.msra.mxu0 0.0
  %1133 = vmatprep.subr.mxu0 0.0
  %1134 = vmatpush1.msra.mxu0 0.0
  %1135 = vmatprep.mubr.f32.mxu0 0.0
  %1136 = vmatmul.mubr.f32.gmra.mrb[0].mxu0 %v1054
  %v1137 = vpop.f32.mrb[0].mxu0
  %v1138 = vadd.f32 0.0, %v1137
  %v1139 = vpop.f32.mrb[0].mxu0
  %1140 = vdwg.mxu0
  %v1141 = vadd.f32 %v1053, %v1138
  %v1142 = vtanh.pop %v1141
  %1143 = vst [vmem:[#allocation2] sm:$0xff] %v1142
  %s1144 = scalar_lea.vmem %s3, 88
  %1145 = vst [vmem:[%s1144] sm:$0xff] %v1142
  %s1146 = scalar_lea.vmem %s0, 96
  %v1147 = vld [vmem:[%s1146] sm:$0xff]
  %v1148 = vld [vmem:[#allocation2] sm:$0xff]
  %v1149 = vld [vmem:[%s2] sm:$0xff]
  %v1150 = vld [vmem:[%s2 + $0x8] sm:$0xff]
  %v1151 = vld [vmem:[%s2 + $0x10] sm:$0xff]
  %v1152 = vld [vmem:[%s2 + $0x18] sm:$0xff]
  %v1153 = vld [vmem:[%s2 + $0x20] sm:$0xff]
  %v1154 = vld [vmem:[%s2 + $0x28] sm:$0xff]
  %v1155 = vld [vmem:[%s2 + $0x30] sm:$0xff]
  %v1156 = vld [vmem:[%s2 + $0x38] sm:$0xff]
  %v1157 = vld [vmem:[%s2 + $0x40] sm:$0xff]
  %v1158 = vld [vmem:[%s2 + $0x48] sm:$0xff]
  %v1159 = vld [vmem:[%s2 + $0x50] sm:$0xff]
  %v1160 = vld [vmem:[%s2 + $0x58] sm:$0xff]
  %v1161 = vld [vmem:[%s2 + $0x60] sm:$0xff]
  %v1162 = vld [vmem:[%s2 + $0x68] sm:$0xff]
  %v1163 = vld [vmem:[%s2 + $0x70] sm:$0xff]
  %v1164 = vld [vmem:[%s2 + $0x78] sm:$0xff]
  %1165 = vmatprep.subr.mxu0 0.0
  %1166 = vmatpush1.msra.mxu0 %v1149
  %1167 = vmatprep.subr.mxu0 0.0
  %1168 = vmatpush1.msra.mxu0 %v1150
  %1169 = vmatprep.subr.mxu0 0.0
  %1170 = vmatpush1.msra.mxu0 %v1151
  %1171 = vmatprep.subr.mxu0 0.0
  %1172 = vmatpush1.msra.mxu0 %v1152
  %1173 = vmatprep.subr.mxu0 0.0
  %1174 = vmatpush1.msra.mxu0 %v1153
  %1175 = vmatprep.subr.mxu0 0.0
  %1176 = vmatpush1.msra.mxu0 %v1154
  %1177 = vmatprep.subr.mxu0 0.0
  %1178 = vmatpush1.msra.mxu0 %v1155
  %1179 = vmatprep.subr.mxu0 0.0
  %1180 = vmatpush1.msra.mxu0 %v1156
  %1181 = vmatprep.subr.mxu0 0.0
  %1182 = vmatpush1.msra.mxu0 %v1157
  %1183 = vmatprep.subr.mxu0 0.0
  %1184 = vmatpush1.msra.mxu0 %v1158
  %1185 = vmatprep.subr.mxu0 0.0
  %1186 = vmatpush1.msra.mxu0 %v1159
  %1187 = vmatprep.subr.mxu0 0.0
  %1188 = vmatpush1.msra.mxu0 %v1160
  %1189 = vmatprep.subr.mxu0 0.0
  %1190 = vmatpush1.msra.mxu0 %v1161
  %1191 = vmatprep.subr.mxu0 0.0
  %1192 = vmatpush1.msra.mxu0 %v1162
  %1193 = vmatprep.subr.mxu0 0.0
  %1194 = vmatpush1.msra.mxu0 %v1163
  %1195 = vmatprep.subr.mxu0 0.0
  %1196 = vmatpush1.msra.mxu0 %v1164
  %1197 = vmatprep.subr.mxu0 0.0
  %1198 = vmatpush1.msra.mxu0 0.0
  %1199 = vmatprep.subr.mxu0 0.0
  %1200 = vmatpush1.msra.mxu0 0.0
  %1201 = vmatprep.subr.mxu0 0.0
  %1202 = vmatpush1.msra.mxu0 0.0
  %1203 = vmatprep.subr.mxu0 0.0
  %1204 = vmatpush1.msra.mxu0 0.0
  %1205 = vmatprep.subr.mxu0 0.0
  %1206 = vmatpush1.msra.mxu0 0.0
  %1207 = vmatprep.subr.mxu0 0.0
  %1208 = vmatpush1.msra.mxu0 0.0
  %1209 = vmatprep.subr.mxu0 0.0
  %1210 = vmatpush1.msra.mxu0 0.0
  %1211 = vmatprep.subr.mxu0 0.0
  %1212 = vmatpush1.msra.mxu0 0.0
  %1213 = vmatprep.subr.mxu0 0.0
  %1214 = vmatpush1.msra.mxu0 0.0
  %1215 = vmatprep.subr.mxu0 0.0
  %1216 = vmatpush1.msra.mxu0 0.0
  %1217 = vmatprep.subr.mxu0 0.0
  %1218 = vmatpush1.msra.mxu0 0.0
  %1219 = vmatprep.subr.mxu0 0.0
  %1220 = vmatpush1.msra.mxu0 0.0
  %1221 = vmatprep.subr.mxu0 0.0
  %1222 = vmatpush1.msra.mxu0 0.0
  %1223 = vmatprep.subr.mxu0 0.0
  %1224 = vmatpush1.msra.mxu0 0.0
  %1225 = vmatprep.subr.mxu0 0.0
  %1226 = vmatpush1.msra.mxu0 0.0
  %1227 = vmatprep.subr.mxu0 0.0
  %1228 = vmatpush1.msra.mxu0 0.0
  %1229 = vmatprep.mubr.f32.mxu0 0.0
  %1230 = vmatmul.mubr.f32.gmra.mrb[0].mxu0 %v1148
  %v1231 = vpop.f32.mrb[0].mxu0
  %v1232 = vadd.f32 0.0, %v1231
  %v1233 = vpop.f32.mrb[0].mxu0
  %1234 = vdwg.mxu0
  %v1235 = vadd.f32 %v1147, %v1232
  %v1236 = vtanh.pop %v1235
  %1237 = vst [vmem:[#allocation2] sm:$0xff] %v1236
  %s1238 = scalar_lea.vmem %s3, 96
  %1239 = vst [vmem:[%s1238] sm:$0xff] %v1236
  %s1240 = scalar_lea.vmem %s0, 104
  %v1241 = vld [vmem:[%s1240] sm:$0xff]
  %v1242 = vld [vmem:[#allocation2] sm:$0xff]
  %v1243 = vld [vmem:[%s2] sm:$0xff]
  %v1244 = vld [vmem:[%s2 + $0x8] sm:$0xff]
  %v1245 = vld [vmem:[%s2 + $0x10] sm:$0xff]
  %v1246 = vld [vmem:[%s2 + $0x18] sm:$0xff]
  %v1247 = vld [vmem:[%s2 + $0x20] sm:$0xff]
  %v1248 = vld [vmem:[%s2 + $0x28] sm:$0xff]
  %v1249 = vld [vmem:[%s2 + $0x30] sm:$0xff]
  %v1250 = vld [vmem:[%s2 + $0x38] sm:$0xff]
  %v1251 = vld [vmem:[%s2 + $0x40] sm:$0xff]
  %v1252 = vld [vmem:[%s2 + $0x48] sm:$0xff]
  %v1253 = vld [vmem:[%s2 + $0x50] sm:$0xff]
  %v1254 = vld [vmem:[%s2 + $0x58] sm:$0xff]
  %v1255 = vld [vmem:[%s2 + $0x60] sm:$0xff]
  %v1256 = vld [vmem:[%s2 + $0x68] sm:$0xff]
  %v1257 = vld [vmem:[%s2 + $0x70] sm:$0xff]
  %v1258 = vld [vmem:[%s2 + $0x78] sm:$0xff]
  %1259 = vmatprep.subr.mxu0 0.0
  %1260 = vmatpush1.msra.mxu0 %v1243
  %1261 = vmatprep.subr.mxu0 0.0
  %1262 = vmatpush1.msra.mxu0 %v1244
  %1263 = vmatprep.subr.mxu0 0.0
  %1264 = vmatpush1.msra.mxu0 %v1245
  %1265 = vmatprep.subr.mxu0 0.0
  %1266 = vmatpush1.msra.mxu0 %v1246
  %1267 = vmatprep.subr.mxu0 0.0
  %1268 = vmatpush1.msra.mxu0 %v1247
  %1269 = vmatprep.subr.mxu0 0.0
  %1270 = vmatpush1.msra.mxu0 %v1248
  %1271 = vmatprep.subr.mxu0 0.0
  %1272 = vmatpush1.msra.mxu0 %v1249
  %1273 = vmatprep.subr.mxu0 0.0
  %1274 = vmatpush1.msra.mxu0 %v1250
  %1275 = vmatprep.subr.mxu0 0.0
  %1276 = vmatpush1.msra.mxu0 %v1251
  %1277 = vmatprep.subr.mxu0 0.0
  %1278 = vmatpush1.msra.mxu0 %v1252
  %1279 = vmatprep.subr.mxu0 0.0
  %1280 = vmatpush1.msra.mxu0 %v1253
  %1281 = vmatprep.subr.mxu0 0.0
  %1282 = vmatpush1.msra.mxu0 %v1254
  %1283 = vmatprep.subr.mxu0 0.0
  %1284 = vmatpush1.msra.mxu0 %v1255
  %1285 = vmatprep.subr.mxu0 0.0
  %1286 = vmatpush1.msra.mxu0 %v1256
  %1287 = vmatprep.subr.mxu0 0.0
  %1288 = vmatpush1.msra.mxu0 %v1257
  %1289 = vmatprep.subr.mxu0 0.0
  %1290 = vmatpush1.msra.mxu0 %v1258
  %1291 = vmatprep.subr.mxu0 0.0
  %1292 = vmatpush1.msra.mxu0 0.0
  %1293 = vmatprep.subr.mxu0 0.0
  %1294 = vmatpush1.msra.mxu0 0.0
  %1295 = vmatprep.subr.mxu0 0.0
  %1296 = vmatpush1.msra.mxu0 0.0
  %1297 = vmatprep.subr.mxu0 0.0
  %1298 = vmatpush1.msra.mxu0 0.0
  %1299 = vmatprep.subr.mxu0 0.0
  %1300 = vmatpush1.msra.mxu0 0.0
  %1301 = vmatprep.subr.mxu0 0.0
  %1302 = vmatpush1.msra.mxu0 0.0
  %1303 = vmatprep.subr.mxu0 0.0
  %1304 = vmatpush1.msra.mxu0 0.0
  %1305 = vmatprep.subr.mxu0 0.0
  %1306 = vmatpush1.msra.mxu0 0.0
  %1307 = vmatprep.subr.mxu0 0.0
  %1308 = vmatpush1.msra.mxu0 0.0
  %1309 = vmatprep.subr.mxu0 0.0
  %1310 = vmatpush1.msra.mxu0 0.0
  %1311 = vmatprep.subr.mxu0 0.0
  %1312 = vmatpush1.msra.mxu0 0.0
  %1313 = vmatprep.subr.mxu0 0.0
  %1314 = vmatpush1.msra.mxu0 0.0
  %1315 = vmatprep.subr.mxu0 0.0
  %1316 = vmatpush1.msra.mxu0 0.0
  %1317 = vmatprep.subr.mxu0 0.0
  %1318 = vmatpush1.msra.mxu0 0.0
  %1319 = vmatprep.subr.mxu0 0.0
  %1320 = vmatpush1.msra.mxu0 0.0
  %1321 = vmatprep.subr.mxu0 0.0
  %1322 = vmatpush1.msra.mxu0 0.0
  %1323 = vmatprep.mubr.f32.mxu0 0.0
  %1324 = vmatmul.mubr.f32.gmra.mrb[0].mxu0 %v1242
  %v1325 = vpop.f32.mrb[0].mxu0
  %v1326 = vadd.f32 0.0, %v1325
  %v1327 = vpop.f32.mrb[0].mxu0
  %1328 = vdwg.mxu0
  %v1329 = vadd.f32 %v1241, %v1326
  %v1330 = vtanh.pop %v1329
  %1331 = vst [vmem:[#allocation2] sm:$0xff] %v1330
  %s1332 = scalar_lea.vmem %s3, 104
  %1333 = vst [vmem:[%s1332] sm:$0xff] %v1330
  %s1334 = scalar_lea.vmem %s0, 112
  %v1335 = vld [vmem:[%s1334] sm:$0xff]
  %v1336 = vld [vmem:[#allocation2] sm:$0xff]
  %v1337 = vld [vmem:[%s2] sm:$0xff]
  %v1338 = vld [vmem:[%s2 + $0x8] sm:$0xff]
  %v1339 = vld [vmem:[%s2 + $0x10] sm:$0xff]
  %v1340 = vld [vmem:[%s2 + $0x18] sm:$0xff]
  %v1341 = vld [vmem:[%s2 + $0x20] sm:$0xff]
  %v1342 = vld [vmem:[%s2 + $0x28] sm:$0xff]
  %v1343 = vld [vmem:[%s2 + $0x30] sm:$0xff]
  %v1344 = vld [vmem:[%s2 + $0x38] sm:$0xff]
  %v1345 = vld [vmem:[%s2 + $0x40] sm:$0xff]
  %v1346 = vld [vmem:[%s2 + $0x48] sm:$0xff]
  %v1347 = vld [vmem:[%s2 + $0x50] sm:$0xff]
  %v1348 = vld [vmem:[%s2 + $0x58] sm:$0xff]
  %v1349 = vld [vmem:[%s2 + $0x60] sm:$0xff]
  %v1350 = vld [vmem:[%s2 + $0x68] sm:$0xff]
  %v1351 = vld [vmem:[%s2 + $0x70] sm:$0xff]
  %v1352 = vld [vmem:[%s2 + $0x78] sm:$0xff]
  %1353 = vmatprep.subr.mxu0 0.0
  %1354 = vmatpush1.msra.mxu0 %v1337
  %1355 = vmatprep.subr.mxu0 0.0
  %1356 = vmatpush1.msra.mxu0 %v1338
  %1357 = vmatprep.subr.mxu0 0.0
  %1358 = vmatpush1.msra.mxu0 %v1339
  %1359 = vmatprep.subr.mxu0 0.0
  %1360 = vmatpush1.msra.mxu0 %v1340
  %1361 = vmatprep.subr.mxu0 0.0
  %1362 = vmatpush1.msra.mxu0 %v1341
  %1363 = vmatprep.subr.mxu0 0.0
  %1364 = vmatpush1.msra.mxu0 %v1342
  %1365 = vmatprep.subr.mxu0 0.0
  %1366 = vmatpush1.msra.mxu0 %v1343
  %1367 = vmatprep.subr.mxu0 0.0
  %1368 = vmatpush1.msra.mxu0 %v1344
  %1369 = vmatprep.subr.mxu0 0.0
  %1370 = vmatpush1.msra.mxu0 %v1345
  %1371 = vmatprep.subr.mxu0 0.0
  %1372 = vmatpush1.msra.mxu0 %v1346
  %1373 = vmatprep.subr.mxu0 0.0
  %1374 = vmatpush1.msra.mxu0 %v1347
  %1375 = vmatprep.subr.mxu0 0.0
  %1376 = vmatpush1.msra.mxu0 %v1348
  %1377 = vmatprep.subr.mxu0 0.0
  %1378 = vmatpush1.msra.mxu0 %v1349
  %1379 = vmatprep.subr.mxu0 0.0
  %1380 = vmatpush1.msra.mxu0 %v1350
  %1381 = vmatprep.subr.mxu0 0.0
  %1382 = vmatpush1.msra.mxu0 %v1351
  %1383 = vmatprep.subr.mxu0 0.0
  %1384 = vmatpush1.msra.mxu0 %v1352
  %1385 = vmatprep.subr.mxu0 0.0
  %1386 = vmatpush1.msra.mxu0 0.0
  %1387 = vmatprep.subr.mxu0 0.0
  %1388 = vmatpush1.msra.mxu0 0.0
  %1389 = vmatprep.subr.mxu0 0.0
  %1390 = vmatpush1.msra.mxu0 0.0
  %1391 = vmatprep.subr.mxu0 0.0
  %1392 = vmatpush1.msra.mxu0 0.0
  %1393 = vmatprep.subr.mxu0 0.0
  %1394 = vmatpush1.msra.mxu0 0.0
  %1395 = vmatprep.subr.mxu0 0.0
  %1396 = vmatpush1.msra.mxu0 0.0
  %1397 = vmatprep.subr.mxu0 0.0
  %1398 = vmatpush1.msra.mxu0 0.0
  %1399 = vmatprep.subr.mxu0 0.0
  %1400 = vmatpush1.msra.mxu0 0.0
  %1401 = vmatprep.subr.mxu0 0.0
  %1402 = vmatpush1.msra.mxu0 0.0
  %1403 = vmatprep.subr.mxu0 0.0
  %1404 = vmatpush1.msra.mxu0 0.0
  %1405 = vmatprep.subr.mxu0 0.0
  %1406 = vmatpush1.msra.mxu0 0.0
  %1407 = vmatprep.subr.mxu0 0.0
  %1408 = vmatpush1.msra.mxu0 0.0
  %1409 = vmatprep.subr.mxu0 0.0
  %1410 = vmatpush1.msra.mxu0 0.0
  %1411 = vmatprep.subr.mxu0 0.0
  %1412 = vmatpush1.msra.mxu0 0.0
  %1413 = vmatprep.subr.mxu0 0.0
  %1414 = vmatpush1.msra.mxu0 0.0
  %1415 = vmatprep.subr.mxu0 0.0
  %1416 = vmatpush1.msra.mxu0 0.0
  %1417 = vmatprep.mubr.f32.mxu0 0.0
  %1418 = vmatmul.mubr.f32.gmra.mrb[0].mxu0 %v1336
  %v1419 = vpop.f32.mrb[0].mxu0
  %v1420 = vadd.f32 0.0, %v1419
  %v1421 = vpop.f32.mrb[0].mxu0
  %1422 = vdwg.mxu0
  %v1423 = vadd.f32 %v1335, %v1420
  %v1424 = vtanh.pop %v1423
  %1425 = vst [vmem:[#allocation2] sm:$0xff] %v1424
  %s1426 = scalar_lea.vmem %s3, 112
  %1427 = vst [vmem:[%s1426] sm:$0xff] %v1424
  %s1428 = scalar_lea.vmem %s0, 120
  %v1429 = vld [vmem:[%s1428] sm:$0xff]
  %v1430 = vld [vmem:[#allocation2] sm:$0xff]
  %v1431 = vld [vmem:[%s2] sm:$0xff]
  %v1432 = vld [vmem:[%s2 + $0x8] sm:$0xff]
  %v1433 = vld [vmem:[%s2 + $0x10] sm:$0xff]
  %v1434 = vld [vmem:[%s2 + $0x18] sm:$0xff]
  %v1435 = vld [vmem:[%s2 + $0x20] sm:$0xff]
  %v1436 = vld [vmem:[%s2 + $0x28] sm:$0xff]
  %v1437 = vld [vmem:[%s2 + $0x30] sm:$0xff]
  %v1438 = vld [vmem:[%s2 + $0x38] sm:$0xff]
  %v1439 = vld [vmem:[%s2 + $0x40] sm:$0xff]
  %v1440 = vld [vmem:[%s2 + $0x48] sm:$0xff]
  %v1441 = vld [vmem:[%s2 + $0x50] sm:$0xff]
  %v1442 = vld [vmem:[%s2 + $0x58] sm:$0xff]
  %v1443 = vld [vmem:[%s2 + $0x60] sm:$0xff]
  %v1444 = vld [vmem:[%s2 + $0x68] sm:$0xff]
  %v1445 = vld [vmem:[%s2 + $0x70] sm:$0xff]
  %v1446 = vld [vmem:[%s2 + $0x78] sm:$0xff]
  %1447 = vmatprep.subr.mxu0 0.0
  %1448 = vmatpush1.msra.mxu0 %v1431
  %1449 = vmatprep.subr.mxu0 0.0
  %1450 = vmatpush1.msra.mxu0 %v1432
  %1451 = vmatprep.subr.mxu0 0.0
  %1452 = vmatpush1.msra.mxu0 %v1433
  %1453 = vmatprep.subr.mxu0 0.0
  %1454 = vmatpush1.msra.mxu0 %v1434
  %1455 = vmatprep.subr.mxu0 0.0
  %1456 = vmatpush1.msra.mxu0 %v1435
  %1457 = vmatprep.subr.mxu0 0.0
  %1458 = vmatpush1.msra.mxu0 %v1436
  %1459 = vmatprep.subr.mxu0 0.0
  %1460 = vmatpush1.msra.mxu0 %v1437
  %1461 = vmatprep.subr.mxu0 0.0
  %1462 = vmatpush1.msra.mxu0 %v1438
  %1463 = vmatprep.subr.mxu0 0.0
  %1464 = vmatpush1.msra.mxu0 %v1439
  %1465 = vmatprep.subr.mxu0 0.0
  %1466 = vmatpush1.msra.mxu0 %v1440
  %1467 = vmatprep.subr.mxu0 0.0
  %1468 = vmatpush1.msra.mxu0 %v1441
  %1469 = vmatprep.subr.mxu0 0.0
  %1470 = vmatpush1.msra.mxu0 %v1442
  %1471 = vmatprep.subr.mxu0 0.0
  %1472 = vmatpush1.msra.mxu0 %v1443
  %1473 = vmatprep.subr.mxu0 0.0
  %1474 = vmatpush1.msra.mxu0 %v1444
  %1475 = vmatprep.subr.mxu0 0.0
  %1476 = vmatpush1.msra.mxu0 %v1445
  %1477 = vmatprep.subr.mxu0 0.0
  %1478 = vmatpush1.msra.mxu0 %v1446
  %1479 = vmatprep.subr.mxu0 0.0
  %1480 = vmatpush1.msra.mxu0 0.0
  %1481 = vmatprep.subr.mxu0 0.0
  %1482 = vmatpush1.msra.mxu0 0.0
  %1483 = vmatprep.subr.mxu0 0.0
  %1484 = vmatpush1.msra.mxu0 0.0
  %1485 = vmatprep.subr.mxu0 0.0
  %1486 = vmatpush1.msra.mxu0 0.0
  %1487 = vmatprep.subr.mxu0 0.0
  %1488 = vmatpush1.msra.mxu0 0.0
  %1489 = vmatprep.subr.mxu0 0.0
  %1490 = vmatpush1.msra.mxu0 0.0
  %1491 = vmatprep.subr.mxu0 0.0
  %1492 = vmatpush1.msra.mxu0 0.0
  %1493 = vmatprep.subr.mxu0 0.0
  %1494 = vmatpush1.msra.mxu0 0.0
  %1495 = vmatprep.subr.mxu0 0.0
  %1496 = vmatpush1.msra.mxu0 0.0
  %1497 = vmatprep.subr.mxu0 0.0
  %1498 = vmatpush1.msra.mxu0 0.0
  %1499 = vmatprep.subr.mxu0 0.0
  %1500 = vmatpush1.msra.mxu0 0.0
  %1501 = vmatprep.subr.mxu0 0.0
  %1502 = vmatpush1.msra.mxu0 0.0
  %1503 = vmatprep.subr.mxu0 0.0
  %1504 = vmatpush1.msra.mxu0 0.0
  %1505 = vmatprep.subr.mxu0 0.0
  %1506 = vmatpush1.msra.mxu0 0.0
  %1507 = vmatprep.subr.mxu0 0.0
  %1508 = vmatpush1.msra.mxu0 0.0
  %1509 = vmatprep.subr.mxu0 0.0
  %1510 = vmatpush1.msra.mxu0 0.0
  %1511 = vmatprep.mubr.f32.mxu0 0.0
  %1512 = vmatmul.mubr.f32.gmra.mrb[0].mxu0 %v1430
  %v1513 = vpop.f32.mrb[0].mxu0
  %v1514 = vadd.f32 0.0, %v1513
  %v1515 = vpop.f32.mrb[0].mxu0
  %1516 = vdwg.mxu0
  %v1517 = vadd.f32 %v1429, %v1514
  %v1518 = vtanh.pop %v1517
  %1519 = vst [vmem:[#allocation2] sm:$0xff] %v1518
  %s1520 = scalar_lea.vmem %s3, 120
  %1521 = vst [vmem:[%s1520] sm:$0xff] %v1518
  // Predicated region
  $region18: #{rnn_model_forward.2} parent=0 // pred_check
    _
  $region19: #{rnn_model_forward.2} parent=0 // pred_check_branch
    %1523 = sbr.rel (0) target = $region21
  $region20: #{rnn_model_forward.2} parent=0 // pred_region
    _
  $region21: #{rnn_model_forward.2} parent=0 // pred_fallthru
    _
  // Predicated region
  $region22: #{rnn_model_forward.2} parent=0 // pred_check
    _
  $region23: #{rnn_model_forward.2} parent=0 // pred_check_branch
    %1525 = sbr.rel (0) target = $region25
  $region24: #{rnn_model_forward.2} parent=0 // pred_region
    _
  $region25: #{rnn_model_forward.2} parent=0 // pred_fallthru
    _

</llo_original>
